<compile_context>
chip_gen: v7x
topology: tpu7x:2x2x1
jax: 0.10.0
libtpu: 0.0.40
codegen_flags: <defaults>
</compile_context>

<pallas_src>
import math

import jax
import jax.numpy as jnp
from jax.experimental import pallas as pl
from jax.experimental.pallas import tpu as pltpu


def _round_up(n, m):
    return ((n + m - 1) // m) * m


def _make_mlp_kernel(num_layers, activation, compute_dtype):
    """Fused MLP kernel: num_layers Linear layers, `activation` applied after
    every layer except the last (matches Feature_net.forward)."""

    def kernel(*refs):
        x_ref = refs[0]
        o_ref = refs[-1]
        w_refs = refs[1:-1]                          # (W0, b0, W1, b1, ...)
        h = x_ref[...].astype(jnp.float32)
        for i in range(num_layers):
            w = w_refs[2 * i][...]                   # (in_i, out_i), compute_dtype
            b = w_refs[2 * i + 1][...]               # (1, out_i), f32
            # bf16 operands, f32 MXU accumulation; everything after stays f32.
            h = jnp.dot(h.astype(compute_dtype), w,
                        preferred_element_type=jnp.float32) + b
            if i < num_layers - 1:
                if activation == "relu":
                    h = jnp.maximum(h, 0.0)
                elif activation == "elu":
                    # expm1 is more accurate near 0; exp/expm1 use the EUP slot.
                    h = jnp.where(h > 0, h, jnp.expm1(h))
        o_ref[...] = h.astype(o_ref.dtype)

    return kernel


def feature_net_forward(x, params, activation="relu", tb=256,
                        compute_dtype=jnp.bfloat16):
    """Run the Feature_net forward pass via a single fused Pallas kernel.

    x:      (B, in_f) float32
    params: list of (W, b) with PyTorch Linear convention W:(out, in), b:(out,)
    """
    if activation is None:
        # PyTorch's forward skips all hidden layers when activation is None
        # (it applies net[-1], which expects a 128-dim input, directly to x).
        # Reproduced faithfully.
        used = [params[-1]]
    else:
        used = list(params)

    B, in_f = x.shape
    out_f = used[-1][0].shape[0]
    num_layers = len(used)

    # ---- lane-dense output: pad the final output dim to a 128-lane multiple ----
    out_pad = _round_up(max(out_f, 128), 128)

    flat_args = []
    layer_dims = []
    for li, (w, b) in enumerate(used):
        wt = jnp.asarray(w, jnp.float32).T               # (in, out)
        bt = jnp.asarray(b, jnp.float32)[None, :]        # (1, out)
        if li == num_layers - 1 and wt.shape[1] != out_pad:
            pad = out_pad - wt.shape[1]
            wt = jnp.pad(wt, ((0, 0), (0, pad)))
            bt = jnp.pad(bt, ((0, 0), (0, pad)))
        layer_dims.append((int(wt.shape[0]), int(wt.shape[1])))
        flat_args.append(wt.astype(compute_dtype))       # pre-cast weights on host
        flat_args.append(bt)                             # keep bias in f32

    # ---- batch tiling: pad B up to a tile multiple, keep the grid >= 2 steps ----
    if B <= tb:
        # shrink the tile for small batches so v7x can still split the
        # "parallel" grid axis across its two TensorCores (and avoid huge padding)
        tb = max(8, _round_up(max(B // 2, 1), 8))
    grid_b = pl.cdiv(B, tb)
    B_pad = grid_b * tb
    x_p = jnp.asarray(x, jnp.float32)
    if B_pad != B:
        x_p = jnp.pad(x_p, ((0, B_pad - B), (0, 0)))

    in_specs = [pl.BlockSpec((tb, in_f), lambda i: (i, 0))]
    for a in flat_args:
        # Grid-invariant operands: constant block index -> Pallas keeps them
        # resident in VMEM and does not re-DMA them on each grid step.
        in_specs.append(pl.BlockSpec(a.shape, lambda i: (0, 0)))
    out_spec = pl.BlockSpec((tb, out_pad), lambda i: (i, 0))

    # ---- scheduler hint ----
    flops = 2 * B_pad * sum(di * do for di, do in layer_dims)
    transcendentals = (B_pad * sum(do for _, do in layer_dims[:-1])
                       if activation == "elu" else 0)
    bytes_accessed = (int(x_p.size) * 4 + B_pad * out_pad * 4
                      + sum(int(a.size) * a.dtype.itemsize for a in flat_args))
    cost = pl.CostEstimate(flops=flops, transcendentals=transcendentals,
                           bytes_accessed=bytes_accessed)

    kernel = _make_mlp_kernel(num_layers, activation, compute_dtype)

    out = pl.pallas_call(
        kernel,
        out_shape=jax.ShapeDtypeStruct((B_pad, out_pad), x_p.dtype),
        grid=(grid_b,),
        in_specs=in_specs,
        out_specs=out_spec,
        compiler_params=pltpu.CompilerParams(
            dimension_semantics=("parallel",)),
        cost_estimate=cost,
    )(x_p, *flat_args)

    # slice off the batch padding and the lane padding of the final layer
    return out[:B, :out_f]


def init_feature_net_params(key, in_f, out_f, hidden_layers=(128, 256, 128)):
    """Deterministic PyTorch-style Linear init: U(-1/sqrt(fan_in), 1/sqrt(fan_in))."""
    dims = [in_f] + list(hidden_layers) + [out_f]
    params = []
    for i in range(len(dims) - 1):
        fan_in, fan_out = dims[i], dims[i + 1]
        key, kw, kb = jax.random.split(key, 3)
        bound = 1.0 / math.sqrt(fan_in)
        w = jax.random.uniform(kw, (fan_out, fan_in), jnp.float32, -bound, bound)
        b = jax.random.uniform(kb, (fan_out,), jnp.float32, -bound, bound)
        params.append((w, b))
    return params


def feature_net_reference(x, params, activation="relu", emulate_bf16=False):
    """Pure-JAX reference with identical forward semantics.

    emulate_bf16=True mimics the kernel's bf16-operand / f32-accumulate matmuls
    (tight comparison target); False is the exact f32 PyTorch math.
    """
    def dense(h, w, b):
        wt = jnp.asarray(w, jnp.float32).T
        if emulate_bf16:
            h = h.astype(jnp.bfloat16)
            wt = wt.astype(jnp.bfloat16)
        return jnp.dot(h, wt, preferred_element_type=jnp.float32) + b

    if activation is None:
        w, b = params[-1]
        return dense(x, w, b)
    h = jnp.asarray(x, jnp.float32)
    for (w, b) in params[:-1]:
        h = dense(h, w, b)
        if activation == "relu":
            h = jnp.maximum(h, 0.0)
        else:  # elu
            h = jnp.where(h > 0, h, jnp.expm1(h))
    w, b = params[-1]
    return dense(h, w, b)


if __name__ == "__main__":
    key = jax.random.PRNGKey(0)
    B, in_f, out_f = 512, 32, 16
    hidden = (128, 256, 128)
    activation = "relu"

    key, kx = jax.random.split(key)
    x = jax.random.normal(kx, (B, in_f), jnp.float32)
    params = init_feature_net_params(key, in_f, out_f, hidden)

    out = feature_net_forward(x, params, activation=activation, tb=256)
    out = jax.block_until_ready(out)
    assert out.shape == (B, out_f)

    # Tight check vs. a reference using the same bf16-operand / f32-acc math.
    ref_bf16 = feature_net_reference(x, params, activation, emulate_bf16=True)
    assert jnp.allclose(out, ref_bf16, atol=2e-3, rtol=2e-3), \
        "mismatch vs bf16-emulating reference"

    # Loose sanity check vs. the exact f32 PyTorch-semantics reference
    # (the gap is only bf16 operand rounding).
    ref_f32 = feature_net_reference(x, params, activation, emulate_bf16=False)
    assert jnp.allclose(out, ref_f32, atol=1e-1, rtol=1e-1), \
        "mismatch vs f32 reference"

    print("KERNEL_OK")
</pallas_src>

<mosaic_0001>
module attributes {stable_mosaic.version = 11 : i64} {
  func.func @kernel(%arg0: i32, %arg1: memref<256x32xf32, #tpu.memory_space<vmem>>, %arg2: memref<32x128xbf16, #tpu.memory_space<vmem>>, %arg3: memref<1x128xf32, #tpu.memory_space<vmem>>, %arg4: memref<128x256xbf16, #tpu.memory_space<vmem>>, %arg5: memref<1x256xf32, #tpu.memory_space<vmem>>, %arg6: memref<256x128xbf16, #tpu.memory_space<vmem>>, %arg7: memref<1x128xf32, #tpu.memory_space<vmem>>, %arg8: memref<128x128xbf16, #tpu.memory_space<vmem>>, %arg9: memref<1x128xf32, #tpu.memory_space<vmem>>, %arg10: memref<256x128xf32, #tpu.memory_space<vmem>>) attributes {dimension_semantics = [#tpu.dimension_semantics<parallel>], iteration_bounds = array<i64: 2>, scalar_prefetch = 0 : i64, scratch_operands = 0 : i64, tpu.core_type = #tpu.core_type<tc>, window_params = [{transform_indices = @transform_0, window_bounds = array<i64: 256, 32>}, {pipeline_mode = #tpu.pipeline_mode<synchronous>, transform_indices = @transform_1, window_bounds = array<i64: 32, 128>}, {pipeline_mode = #tpu.pipeline_mode<synchronous>, transform_indices = @transform_2, window_bounds = array<i64: 1, 128>}, {pipeline_mode = #tpu.pipeline_mode<synchronous>, transform_indices = @transform_3, window_bounds = array<i64: 128, 256>}, {pipeline_mode = #tpu.pipeline_mode<synchronous>, transform_indices = @transform_4, window_bounds = array<i64: 1, 256>}, {pipeline_mode = #tpu.pipeline_mode<synchronous>, transform_indices = @transform_5, window_bounds = array<i64: 256, 128>}, {pipeline_mode = #tpu.pipeline_mode<synchronous>, transform_indices = @transform_6, window_bounds = array<i64: 1, 128>}, {pipeline_mode = #tpu.pipeline_mode<synchronous>, transform_indices = @transform_7, window_bounds = array<i64: 128, 128>}, {pipeline_mode = #tpu.pipeline_mode<synchronous>, transform_indices = @transform_8, window_bounds = array<i64: 1, 128>}, {transform_indices = @transform_9, window_bounds = array<i64: 256, 128>}]} {
    %c0 = arith.constant 0 : index
    %c0_0 = arith.constant 0 : index
    %0 = vector.load %arg1[%c0, %c0_0] : memref<256x32xf32, #tpu.memory_space<vmem>>, vector<256x32xf32>
    %c0_1 = arith.constant 0 : index
    %c0_2 = arith.constant 0 : index
    %1 = vector.load %arg2[%c0_1, %c0_2] : memref<32x128xbf16, #tpu.memory_space<vmem>>, vector<32x128xbf16>
    %c0_3 = arith.constant 0 : index
    %c0_4 = arith.constant 0 : index
    %2 = vector.load %arg3[%c0_3, %c0_4] : memref<1x128xf32, #tpu.memory_space<vmem>>, vector<1x128xf32>
    %3 = arith.truncf %0 : vector<256x32xf32> to vector<256x32xbf16>
    %cst = arith.constant dense<0.000000e+00> : vector<256x128xf32>
    %4 = tpu.matmul %3, %1, %cst {dimension_numbers = #tpu.dot_dimension_numbers<[1], [0], [0], [1], [0, 0, 1, 1], [], []>} : vector<256x32xbf16>, vector<32x128xbf16>, vector<256x128xf32> -> vector<256x128xf32>
    %5 = vector.broadcast %2 : vector<1x128xf32> to vector<256x128xf32>
    %6 = arith.addf %4, %5 : vector<256x128xf32>
    %cst_5 = arith.constant 0.000000e+00 : f32
    %7 = vector.broadcast %cst_5 : f32 to vector<256x128xf32>
    %8 = arith.maximumf %6, %7 : vector<256x128xf32>
    %c0_6 = arith.constant 0 : index
    %c0_7 = arith.constant 0 : index
    %9 = vector.load %arg4[%c0_6, %c0_7] : memref<128x256xbf16, #tpu.memory_space<vmem>>, vector<128x256xbf16>
    %c0_8 = arith.constant 0 : index
    %c0_9 = arith.constant 0 : index
    %10 = vector.load %arg5[%c0_8, %c0_9] : memref<1x256xf32, #tpu.memory_space<vmem>>, vector<1x256xf32>
    %11 = arith.truncf %8 : vector<256x128xf32> to vector<256x128xbf16>
    %cst_10 = arith.constant dense<0.000000e+00> : vector<256x256xf32>
    %12 = tpu.matmul %11, %9, %cst_10 {dimension_numbers = #tpu.dot_dimension_numbers<[1], [0], [0], [1], [0, 0, 1, 1], [], []>} : vector<256x128xbf16>, vector<128x256xbf16>, vector<256x256xf32> -> vector<256x256xf32>
    %13 = vector.broadcast %10 : vector<1x256xf32> to vector<256x256xf32>
    %14 = arith.addf %12, %13 : vector<256x256xf32>
    %cst_11 = arith.constant 0.000000e+00 : f32
    %15 = vector.broadcast %cst_11 : f32 to vector<256x256xf32>
    %16 = arith.maximumf %14, %15 : vector<256x256xf32>
    %c0_12 = arith.constant 0 : index
    %c0_13 = arith.constant 0 : index
    %17 = vector.load %arg6[%c0_12, %c0_13] : memref<256x128xbf16, #tpu.memory_space<vmem>>, vector<256x128xbf16>
    %c0_14 = arith.constant 0 : index
    %c0_15 = arith.constant 0 : index
    %18 = vector.load %arg7[%c0_14, %c0_15] : memref<1x128xf32, #tpu.memory_space<vmem>>, vector<1x128xf32>
    %19 = arith.truncf %16 : vector<256x256xf32> to vector<256x256xbf16>
    %cst_16 = arith.constant dense<0.000000e+00> : vector<256x128xf32>
    %20 = tpu.matmul %19, %17, %cst_16 {dimension_numbers = #tpu.dot_dimension_numbers<[1], [0], [0], [1], [0, 0, 1, 1], [], []>} : vector<256x256xbf16>, vector<256x128xbf16>, vector<256x128xf32> -> vector<256x128xf32>
    %21 = vector.broadcast %18 : vector<1x128xf32> to vector<256x128xf32>
    %22 = arith.addf %20, %21 : vector<256x128xf32>
    %cst_17 = arith.constant 0.000000e+00 : f32
    %23 = vector.broadcast %cst_17 : f32 to vector<256x128xf32>
    %24 = arith.maximumf %22, %23 : vector<256x128xf32>
    %c0_18 = arith.constant 0 : index
    %c0_19 = arith.constant 0 : index
    %25 = vector.load %arg8[%c0_18, %c0_19] : memref<128x128xbf16, #tpu.memory_space<vmem>>, vector<128x128xbf16>
    %c0_20 = arith.constant 0 : index
    %c0_21 = arith.constant 0 : index
    %26 = vector.load %arg9[%c0_20, %c0_21] : memref<1x128xf32, #tpu.memory_space<vmem>>, vector<1x128xf32>
    %27 = arith.truncf %24 : vector<256x128xf32> to vector<256x128xbf16>
    %cst_22 = arith.constant dense<0.000000e+00> : vector<256x128xf32>
    %28 = tpu.matmul %27, %25, %cst_22 {dimension_numbers = #tpu.dot_dimension_numbers<[1], [0], [0], [1], [0, 0, 1, 1], [], []>} : vector<256x128xbf16>, vector<128x128xbf16>, vector<256x128xf32> -> vector<256x128xf32>
    %29 = vector.broadcast %26 : vector<1x128xf32> to vector<256x128xf32>
    %30 = arith.addf %28, %29 : vector<256x128xf32>
    %c0_23 = arith.constant 0 : index
    %c0_24 = arith.constant 0 : index
    %31 = vector.load %arg10[%c0_23, %c0_24] : memref<256x128xf32, #tpu.memory_space<vmem>>, vector<256x128xf32>
    tpu.vector_store %arg10[%c0_23, %c0_24], %30 {strides = array<i32>} : memref<256x128xf32, #tpu.memory_space<vmem>>, vector<256x128xf32>,
    return
  }
  func.func @transform_0(%arg0: i32) -> (i32, i32) {
    %c0_i32 = arith.constant 0 : i32
    %c0_i32_0 = arith.constant 0 : i32
    return %arg0, %c0_i32 : i32, i32
  }
  func.func @transform_1(%arg0: i32) -> (i32, i32) {
    %c0_i32 = arith.constant 0 : i32
    %c0_i32_0 = arith.constant 0 : i32
    %c0_i32_1 = arith.constant 0 : i32
    return %c0_i32, %c0_i32_0 : i32, i32
  }
  func.func @transform_2(%arg0: i32) -> (i32, i32) {
    %c0_i32 = arith.constant 0 : i32
    %c0_i32_0 = arith.constant 0 : i32
    %c0_i32_1 = arith.constant 0 : i32
    return %c0_i32, %c0_i32_0 : i32, i32
  }
  func.func @transform_3(%arg0: i32) -> (i32, i32) {
    %c0_i32 = arith.constant 0 : i32
    %c0_i32_0 = arith.constant 0 : i32
    %c0_i32_1 = arith.constant 0 : i32
    return %c0_i32, %c0_i32_0 : i32, i32
  }
  func.func @transform_4(%arg0: i32) -> (i32, i32) {
    %c0_i32 = arith.constant 0 : i32
    %c0_i32_0 = arith.constant 0 : i32
    %c0_i32_1 = arith.constant 0 : i32
    return %c0_i32, %c0_i32_0 : i32, i32
  }
  func.func @transform_5(%arg0: i32) -> (i32, i32) {
    %c0_i32 = arith.constant 0 : i32
    %c0_i32_0 = arith.constant 0 : i32
    %c0_i32_1 = arith.constant 0 : i32
    return %c0_i32, %c0_i32_0 : i32, i32
  }
  func.func @transform_6(%arg0: i32) -> (i32, i32) {
    %c0_i32 = arith.constant 0 : i32
    %c0_i32_0 = arith.constant 0 : i32
    %c0_i32_1 = arith.constant 0 : i32
    return %c0_i32, %c0_i32_0 : i32, i32
  }
  func.func @transform_7(%arg0: i32) -> (i32, i32) {
    %c0_i32 = arith.constant 0 : i32
    %c0_i32_0 = arith.constant 0 : i32
    %c0_i32_1 = arith.constant 0 : i32
    return %c0_i32, %c0_i32_0 : i32, i32
  }
  func.func @transform_8(%arg0: i32) -> (i32, i32) {
    %c0_i32 = arith.constant 0 : i32
    %c0_i32_0 = arith.constant 0 : i32
    %c0_i32_1 = arith.constant 0 : i32
    return %c0_i32, %c0_i32_0 : i32, i32
  }
  func.func @transform_9(%arg0: i32) -> (i32, i32) {
    %c0_i32 = arith.constant 0 : i32
    %c0_i32_0 = arith.constant 0 : i32
    return %arg0, %c0_i32 : i32, i32
  }
}

</mosaic_0001>

<llo_original>
// kernel: tpu_custom_call.1
$region0: #{tpu_custom_call.1}
  #allocation0 [shape = 'u32[]', space=smem, size = 0x4, offset = 0x4, fixed_abs, tag = 'smem constant byte address 0x4 - core index']
  #allocation1 [shape = 'u32[144,128]{1,0:T(1,128)}', space=vmem, size = 0x12000, scoped, tag = 'internal scratch']
  %s0 = inlined_call_operand.vmem [shape: f32[512,32], index: 0, kind: input, shape index: {}]
  %s1 = inlined_call_operand.vmem [shape: bf16[32,128], index: 1, kind: input, shape index: {}]
  %s2 = inlined_call_operand.vmem [shape: f32[1,128], index: 2, kind: input, shape index: {}]
  %s3 = inlined_call_operand.vmem [shape: bf16[128,256], index: 3, kind: input, shape index: {}]
  %s4 = inlined_call_operand.vmem [shape: f32[1,256], index: 4, kind: input, shape index: {}]
  %s5 = inlined_call_operand.vmem [shape: bf16[256,128], index: 5, kind: input, shape index: {}]
  %s6 = inlined_call_operand.vmem [shape: f32[1,128], index: 6, kind: input, shape index: {}]
  %s7 = inlined_call_operand.vmem [shape: bf16[128,128], index: 7, kind: input, shape index: {}]
  %s8 = inlined_call_operand.vmem [shape: f32[1,128], index: 8, kind: input, shape index: {}]
  %s9 = inlined_call_operand.hbm [shape: f32[512,128], index: 9, kind: output, shape index: {}]
  %s10 = sld [smem:[#allocation0]]
  $region69: #{tpu_custom_call.1} parent=0
    _
  %s12 = ssub.s32 1, %s10
  %s13 = scalar_select 0, %s12, %s10
  $region1: #{tpu_custom_call.1} parent=0
    #allocation2 [shape = 'u8[262144]{0}', space=vmem, size = 0x40000, scoped, tag = 'output window, operand 0']
    #allocation3 [shape = 's32[2]{0}', space=sflag, size = 0x8, scoped, tag = 'scoped memory for tpu_custom_call.1']
    %14 = vsyncpa [#allocation3], 0
    %s15 = scalar_lea.sflag [#allocation3], 1
    %16 = vsyncpa %s15, 0
    loop: start=0, step=1, limit=4
    $region2: #{tpu_custom_call.1} parent=1 // loop_pre_header
      _
    $region3: #{tpu_custom_call.1} parent=1 // loop_header
      %s18 = sphi 0, %s22
      %p19 = scmp.ge.s32.totalorder %s18, 4
      %s28 = sphi 0, %s30
      %s31 = sphi 0, %s28
      %s32 = sphi 0, %s31
      %s48 = sphi 0, %s32
      %s52 = sphi 0, %s52
      %s54 = sphi 0, %s52
      %s55 = sphi 0, %s54
      %s69 = sphi 0, %s55
      %s73 = sphi 0, %s73
      %s75 = sphi 0, %s73
      %s76 = sphi 0, %s75
      %s90 = sphi 0, %s76
      %s94 = sphi 0, %s94
      %s96 = sphi 0, %s94
      %s97 = sphi 0, %s96
      %s111 = sphi 0, %s97
      %s115 = sphi 0, %s115
      %s117 = sphi 0, %s115
      %s118 = sphi 0, %s117
      %s132 = sphi 0, %s118
      %s136 = sphi 0, %s136
      %s138 = sphi 0, %s136
      %s139 = sphi 0, %s138
      %s153 = sphi 0, %s139
      %s157 = sphi 0, %s157
      %s159 = sphi 0, %s157
      %s160 = sphi 0, %s159
      %s174 = sphi 0, %s160
      %s178 = sphi 0, %s178
      %s180 = sphi 0, %s178
      %s181 = sphi 0, %s180
      %s195 = sphi 0, %s181
      %s199 = sphi 0, %s199
      %s201 = sphi 0, %s199
      %s202 = sphi 0, %s201
      %s216 = sphi 0, %s202
      %s222 = sphi 0, %s224
      %s225 = sphi 0, %s222
      %s226 = sphi 0, %s225
      %s242 = sphi 0, %s226
    $region4: #{tpu_custom_call.1} parent=1 // loop_header_branch
      %21 = sbr.rel (%p19) target = $region8
    $region5: #{tpu_custom_call.1} parent=1 // loop_body
      %s23 = ssub.s32 %s18, 1
      %s24 = ssub.s32 %s18, 2
      %s25 = sadd.s32 %s18, 1
      %s26 = ssub.s32 %s18, %s25
      %p27 = scmp.eq.s32.totalorder %s26, 0
      %s29 = sadd.s32 %s28, 1
      %s30 = scalar_select %p27, %s28, %s29
      %p33 = pneg %p27
      %p34 = scmp.eq.s32.totalorder %s18, 1
      %p35 = por %p33, %p34
      %p36 = scmp.ne.s32.totalorder %s28, %s31
      %p37 = scmp.eq.s32.totalorder %s18, 0
      %p38 = por %p36, %p37
      %p39 = scmp.ne.s32.totalorder %s28, %s31
      %p40 = scmp.eq.s32.totalorder %s23, 1
      %p41 = por %p39, %p40
      %p42 = scmp.ne.s32.totalorder %s31, %s32
      %p43 = scmp.eq.s32.totalorder %s23, 0
      %p44 = por %p42, %p43
      %p45 = scmp.ne.s32.totalorder %s31, %s32
      %p46 = scmp.eq.s32.totalorder %s24, 1
      %p47 = por %p45, %p46
      %p49 = scmp.ne.s32.totalorder %s32, %s48
      %p50 = scmp.eq.s32.totalorder %s24, 0
      %p51 = por %p49, %p50
      %s53 = sadd.s32 %s52, 1
      %p56 = scmp.eq.s32.totalorder %s18, 1
      %p57 = scmp.ne.s32.totalorder %s52, %s54
      %p58 = scmp.eq.s32.totalorder %s18, 0
      %p59 = por %p57, %p58
      %p60 = scmp.ne.s32.totalorder %s52, %s54
      %p61 = scmp.eq.s32.totalorder %s23, 1
      %p62 = por %p60, %p61
      %p63 = scmp.ne.s32.totalorder %s54, %s55
      %p64 = scmp.eq.s32.totalorder %s23, 0
      %p65 = por %p63, %p64
      %p66 = scmp.ne.s32.totalorder %s54, %s55
      %p67 = scmp.eq.s32.totalorder %s24, 1
      %p68 = por %p66, %p67
      %p70 = scmp.ne.s32.totalorder %s55, %s69
      %p71 = scmp.eq.s32.totalorder %s24, 0
      %p72 = por %p70, %p71
      %s74 = sadd.s32 %s73, 1
      %p77 = scmp.eq.s32.totalorder %s18, 1
      %p78 = scmp.ne.s32.totalorder %s73, %s75
      %p79 = scmp.eq.s32.totalorder %s18, 0
      %p80 = por %p78, %p79
      %p81 = scmp.ne.s32.totalorder %s73, %s75
      %p82 = scmp.eq.s32.totalorder %s23, 1
      %p83 = por %p81, %p82
      %p84 = scmp.ne.s32.totalorder %s75, %s76
      %p85 = scmp.eq.s32.totalorder %s23, 0
      %p86 = por %p84, %p85
      %p87 = scmp.ne.s32.totalorder %s75, %s76
      %p88 = scmp.eq.s32.totalorder %s24, 1
      %p89 = por %p87, %p88
      %p91 = scmp.ne.s32.totalorder %s76, %s90
      %p92 = scmp.eq.s32.totalorder %s24, 0
      %p93 = por %p91, %p92
      %s95 = sadd.s32 %s94, 1
      %p98 = scmp.eq.s32.totalorder %s18, 1
      %p99 = scmp.ne.s32.totalorder %s94, %s96
      %p100 = scmp.eq.s32.totalorder %s18, 0
      %p101 = por %p99, %p100
      %p102 = scmp.ne.s32.totalorder %s94, %s96
      %p103 = scmp.eq.s32.totalorder %s23, 1
      %p104 = por %p102, %p103
      %p105 = scmp.ne.s32.totalorder %s96, %s97
      %p106 = scmp.eq.s32.totalorder %s23, 0
      %p107 = por %p105, %p106
      %p108 = scmp.ne.s32.totalorder %s96, %s97
      %p109 = scmp.eq.s32.totalorder %s24, 1
      %p110 = por %p108, %p109
      %p112 = scmp.ne.s32.totalorder %s97, %s111
      %p113 = scmp.eq.s32.totalorder %s24, 0
      %p114 = por %p112, %p113
      %s116 = sadd.s32 %s115, 1
      %p119 = scmp.eq.s32.totalorder %s18, 1
      %p120 = scmp.ne.s32.totalorder %s115, %s117
      %p121 = scmp.eq.s32.totalorder %s18, 0
      %p122 = por %p120, %p121
      %p123 = scmp.ne.s32.totalorder %s115, %s117
      %p124 = scmp.eq.s32.totalorder %s23, 1
      %p125 = por %p123, %p124
      %p126 = scmp.ne.s32.totalorder %s117, %s118
      %p127 = scmp.eq.s32.totalorder %s23, 0
      %p128 = por %p126, %p127
      %p129 = scmp.ne.s32.totalorder %s117, %s118
      %p130 = scmp.eq.s32.totalorder %s24, 1
      %p131 = por %p129, %p130
      %p133 = scmp.ne.s32.totalorder %s118, %s132
      %p134 = scmp.eq.s32.totalorder %s24, 0
      %p135 = por %p133, %p134
      %s137 = sadd.s32 %s136, 1
      %p140 = scmp.eq.s32.totalorder %s18, 1
      %p141 = scmp.ne.s32.totalorder %s136, %s138
      %p142 = scmp.eq.s32.totalorder %s18, 0
      %p143 = por %p141, %p142
      %p144 = scmp.ne.s32.totalorder %s136, %s138
      %p145 = scmp.eq.s32.totalorder %s23, 1
      %p146 = por %p144, %p145
      %p147 = scmp.ne.s32.totalorder %s138, %s139
      %p148 = scmp.eq.s32.totalorder %s23, 0
      %p149 = por %p147, %p148
      %p150 = scmp.ne.s32.totalorder %s138, %s139
      %p151 = scmp.eq.s32.totalorder %s24, 1
      %p152 = por %p150, %p151
      %p154 = scmp.ne.s32.totalorder %s139, %s153
      %p155 = scmp.eq.s32.totalorder %s24, 0
      %p156 = por %p154, %p155
      %s158 = sadd.s32 %s157, 1
      %p161 = scmp.eq.s32.totalorder %s18, 1
      %p162 = scmp.ne.s32.totalorder %s157, %s159
      %p163 = scmp.eq.s32.totalorder %s18, 0
      %p164 = por %p162, %p163
      %p165 = scmp.ne.s32.totalorder %s157, %s159
      %p166 = scmp.eq.s32.totalorder %s23, 1
      %p167 = por %p165, %p166
      %p168 = scmp.ne.s32.totalorder %s159, %s160
      %p169 = scmp.eq.s32.totalorder %s23, 0
      %p170 = por %p168, %p169
      %p171 = scmp.ne.s32.totalorder %s159, %s160
      %p172 = scmp.eq.s32.totalorder %s24, 1
      %p173 = por %p171, %p172
      %p175 = scmp.ne.s32.totalorder %s160, %s174
      %p176 = scmp.eq.s32.totalorder %s24, 0
      %p177 = por %p175, %p176
      %s179 = sadd.s32 %s178, 1
      %p182 = scmp.eq.s32.totalorder %s18, 1
      %p183 = scmp.ne.s32.totalorder %s178, %s180
      %p184 = scmp.eq.s32.totalorder %s18, 0
      %p185 = por %p183, %p184
      %p186 = scmp.ne.s32.totalorder %s178, %s180
      %p187 = scmp.eq.s32.totalorder %s23, 1
      %p188 = por %p186, %p187
      %p189 = scmp.ne.s32.totalorder %s180, %s181
      %p190 = scmp.eq.s32.totalorder %s23, 0
      %p191 = por %p189, %p190
      %p192 = scmp.ne.s32.totalorder %s180, %s181
      %p193 = scmp.eq.s32.totalorder %s24, 1
      %p194 = por %p192, %p193
      %p196 = scmp.ne.s32.totalorder %s181, %s195
      %p197 = scmp.eq.s32.totalorder %s24, 0
      %p198 = por %p196, %p197
      %s200 = sadd.s32 %s199, 1
      %p203 = scmp.eq.s32.totalorder %s18, 1
      %p204 = scmp.ne.s32.totalorder %s199, %s201
      %p205 = scmp.eq.s32.totalorder %s18, 0
      %p206 = por %p204, %p205
      %p207 = scmp.ne.s32.totalorder %s199, %s201
      %p208 = scmp.eq.s32.totalorder %s23, 1
      %p209 = por %p207, %p208
      %p210 = scmp.ne.s32.totalorder %s201, %s202
      %p211 = scmp.eq.s32.totalorder %s23, 0
      %p212 = por %p210, %p211
      %p213 = scmp.ne.s32.totalorder %s201, %s202
      %p214 = scmp.eq.s32.totalorder %s24, 1
      %p215 = por %p213, %p214
      %p217 = scmp.ne.s32.totalorder %s202, %s216
      %p218 = scmp.eq.s32.totalorder %s24, 0
      %p219 = por %p217, %p218
      %s220 = ssub.s32 %s18, %s25
      %p221 = scmp.eq.s32.totalorder %s220, 0
      %s223 = sadd.s32 %s222, 1
      %s224 = scalar_select %p221, %s222, %s223
      %p227 = pneg %p221
      %p228 = scmp.eq.s32.totalorder %s18, 1
      %p229 = por %p227, %p228
      %p230 = scmp.ne.s32.totalorder %s222, %s225
      %p231 = scmp.eq.s32.totalorder %s18, 0
      %p232 = por %p230, %p231
      %p233 = scmp.ne.s32.totalorder %s222, %s225
      %p234 = scmp.eq.s32.totalorder %s23, 1
      %p235 = por %p233, %p234
      %p236 = scmp.ne.s32.totalorder %s225, %s226
      %p237 = scmp.eq.s32.totalorder %s23, 0
      %p238 = por %p236, %p237
      %p239 = scmp.ne.s32.totalorder %s225, %s226
      %p240 = scmp.eq.s32.totalorder %s24, 1
      %p241 = por %p239, %p240
      %p243 = scmp.ne.s32.totalorder %s226, %s242
      %p244 = scmp.eq.s32.totalorder %s24, 0
      %p245 = por %p243, %p244
      %p246 = scmp.le.s32.totalorder 1, %s18
      %p247 = scmp.lt.s32.totalorder %s18, 3
      %p248 = pnand %p246, %p247
      %p249 = pneg %p248
      // Predicated region
      $region9: #{tpu_custom_call.1} parent=5 // pred_check
        _
      $region10: #{tpu_custom_call.1} parent=5 // pred_check_branch
        %251 = sbr.rel (%p248) target = $region12
      $region11: #{tpu_custom_call.1} parent=5 // pred_region
        %s252 = ssub.s32 %s18, 1
        // Predicated region
        $region13: #{tpu_custom_call.1} parent=11 // pred_check
          %p253 = pneg %p65
        $region14: #{tpu_custom_call.1} parent=11 // pred_check_branch
          %255 = sbr.rel (%p253) target = $region16
        $region15: #{tpu_custom_call.1} parent=11 // pred_region
          _
        $region16: #{tpu_custom_call.1} parent=11 // pred_fallthru
          _
        // Predicated region
        $region17: #{tpu_custom_call.1} parent=11 // pred_check
          %p256 = pneg %p86
        $region18: #{tpu_custom_call.1} parent=11 // pred_check_branch
          %258 = sbr.rel (%p256) target = $region20
        $region19: #{tpu_custom_call.1} parent=11 // pred_region
          _
        $region20: #{tpu_custom_call.1} parent=11 // pred_fallthru
          _
        // Predicated region
        $region21: #{tpu_custom_call.1} parent=11 // pred_check
          %p259 = pneg %p107
        $region22: #{tpu_custom_call.1} parent=11 // pred_check_branch
          %261 = sbr.rel (%p259) target = $region24
        $region23: #{tpu_custom_call.1} parent=11 // pred_region
          _
        $region24: #{tpu_custom_call.1} parent=11 // pred_fallthru
          _
        // Predicated region
        $region25: #{tpu_custom_call.1} parent=11 // pred_check
          %p262 = pneg %p128
        $region26: #{tpu_custom_call.1} parent=11 // pred_check_branch
          %264 = sbr.rel (%p262) target = $region28
        $region27: #{tpu_custom_call.1} parent=11 // pred_region
          _
        $region28: #{tpu_custom_call.1} parent=11 // pred_fallthru
          _
        // Predicated region
        $region29: #{tpu_custom_call.1} parent=11 // pred_check
          %p265 = pneg %p149
        $region30: #{tpu_custom_call.1} parent=11 // pred_check_branch
          %267 = sbr.rel (%p265) target = $region32
        $region31: #{tpu_custom_call.1} parent=11 // pred_region
          _
        $region32: #{tpu_custom_call.1} parent=11 // pred_fallthru
          _
        // Predicated region
        $region33: #{tpu_custom_call.1} parent=11 // pred_check
          %p268 = pneg %p170
        $region34: #{tpu_custom_call.1} parent=11 // pred_check_branch
          %270 = sbr.rel (%p268) target = $region36
        $region35: #{tpu_custom_call.1} parent=11 // pred_region
          _
        $region36: #{tpu_custom_call.1} parent=11 // pred_fallthru
          _
        // Predicated region
        $region37: #{tpu_custom_call.1} parent=11 // pred_check
          %p271 = pneg %p191
        $region38: #{tpu_custom_call.1} parent=11 // pred_check_branch
          %273 = sbr.rel (%p271) target = $region40
        $region39: #{tpu_custom_call.1} parent=11 // pred_region
          _
        $region40: #{tpu_custom_call.1} parent=11 // pred_fallthru
          _
        // Predicated region
        $region41: #{tpu_custom_call.1} parent=11 // pred_check
          %p274 = pneg %p212
        $region42: #{tpu_custom_call.1} parent=11 // pred_check_branch
          %276 = sbr.rel (%p274) target = $region44
        $region43: #{tpu_custom_call.1} parent=11 // pred_region
          _
        $region44: #{tpu_custom_call.1} parent=11 // pred_fallthru
          _
      $region12: #{tpu_custom_call.1} parent=5 // pred_fallthru
        _
      %p277 = scmp.lt.s32.totalorder %s18, 2
      // Predicated region
      $region45: #{tpu_custom_call.1} parent=5 // pred_check
        %p278 = pneg %p277
      $region46: #{tpu_custom_call.1} parent=5 // pred_check_branch
        %280 = sbr.rel (%p278) target = $region48
      $region47: #{tpu_custom_call.1} parent=5 // pred_region
        // Predicated region
        $region49: #{tpu_custom_call.1} parent=47 // pred_check
          %p281 = pneg %p38
        $region50: #{tpu_custom_call.1} parent=47 // pred_check_branch
          %283 = sbr.rel (%p281) target = $region52
        $region51: #{tpu_custom_call.1} parent=47 // pred_region
          %s284 = smul.u32 32, %s18
          %p285 = scmp.lt.s32.totalorder %s284, 63
          %s286 = scalar_select %p285, %s284, 63
          %s287 = smul.addr %s286, 8
          %s288 = scalar_lea.vmem %s0, %s287
          %s289 = smul.u32 32, %s18
        $region52: #{tpu_custom_call.1} parent=47 // pred_fallthru
          _
      $region48: #{tpu_custom_call.1} parent=5 // pred_fallthru
        _
      %p290 = scmp.le.s32.totalorder 1, %s18
      %p291 = scmp.lt.s32.totalorder %s18, 3
      %p292 = pnand %p290, %p291
      %p293 = pneg %p292
      // Predicated region
      $region53: #{tpu_custom_call.1} parent=5 // pred_check
        _
      $region54: #{tpu_custom_call.1} parent=5 // pred_check_branch
        %295 = sbr.rel (%p292) target = $region56
      $region55: #{tpu_custom_call.1} parent=5 // pred_region
        %s296 = ssub.s32 %s18, 1
        %s297 = smul.u32 32, %s23
        %p298 = scmp.lt.s32.totalorder %s297, 63
        %s299 = scalar_select %p298, %s297, 63
        %s300 = smul.addr %s299, 8
        %s301 = scalar_lea.vmem %s0, %s300
        %p302 = pneg %p44
        %p303 = pneg %p41
        %p304 = pneg %p65
        %p305 = pneg %p62
        %p306 = pneg %p86
        %p307 = pneg %p83
        %p308 = pneg %p107
        %p309 = pneg %p104
        %p310 = pneg %p128
        %p311 = pneg %p125
        %p312 = pneg %p149
        %p313 = pneg %p146
        %p314 = pneg %p170
        %p315 = pneg %p167
        %p316 = pneg %p191
        %p317 = pneg %p188
        %p318 = pneg %p212
        %p319 = pneg %p209
        %p320 = pneg %p238
        %p321 = pneg %p235
        %s322 = sand.u32 %s225, 1
        %s323 = scalar_lea.sflag [#allocation3], %s322
        %s324 = sand.u32 %s225, 1
        %s325 = smul.addr %s324, 256
        %s326 = scalar_lea.vmem [#allocation2], %s325
        %s327 = smul.u32 32, %s23
        %p328 = scmp.lt.s32.totalorder %s327, 63
        %s329 = scalar_select %p328, %s327, 63
        %s330 = smul.addr %s329, 8
        %s331 = scalar_lea.vmem %s0, %s330
        %s332 = smul.u32 32, %s23
        %s333 = smul.u32 32, %s23
        %v335 = vld [vmem:[%s331] sm:$0xff]
        %v336 = vld [vmem:[%s331 + $0x8] sm:$0xff]
        %v337 = vld [vmem:[%s331 + $0x10] sm:$0xff]
        %v338 = vld [vmem:[%s331 + $0x18] sm:$0xff]
        %v339 = vld [vmem:[%s331 + $0x20] sm:$0xff]
        %v340 = vld [vmem:[%s331 + $0x28] sm:$0xff]
        %v341 = vld [vmem:[%s331 + $0x30] sm:$0xff]
        %v342 = vld [vmem:[%s331 + $0x38] sm:$0xff]
        %v343 = vld [vmem:[%s331 + $0x40] sm:$0xff]
        %v344 = vld [vmem:[%s331 + $0x48] sm:$0xff]
        %v345 = vld [vmem:[%s331 + $0x50] sm:$0xff]
        %v346 = vld [vmem:[%s331 + $0x58] sm:$0xff]
        %v347 = vld [vmem:[%s331 + $0x60] sm:$0xff]
        %v348 = vld [vmem:[%s331 + $0x68] sm:$0xff]
        %v349 = vld [vmem:[%s331 + $0x70] sm:$0xff]
        %v350 = vld [vmem:[%s331 + $0x78] sm:$0xff]
        %v351 = vld [vmem:[%s331 + $0x80] sm:$0xff]
        %v352 = vld [vmem:[%s331 + $0x88] sm:$0xff]
        %v353 = vld [vmem:[%s331 + $0x90] sm:$0xff]
        %v354 = vld [vmem:[%s331 + $0x98] sm:$0xff]
        %v355 = vld [vmem:[%s331 + $0xa0] sm:$0xff]
        %v356 = vld [vmem:[%s331 + $0xa8] sm:$0xff]
        %v357 = vld [vmem:[%s331 + $0xb0] sm:$0xff]
        %v358 = vld [vmem:[%s331 + $0xb8] sm:$0xff]
        %v359 = vld [vmem:[%s331 + $0xc0] sm:$0xff]
        %v360 = vld [vmem:[%s331 + $0xc8] sm:$0xff]
        %v361 = vld [vmem:[%s331 + $0xd0] sm:$0xff]
        %v362 = vld [vmem:[%s331 + $0xd8] sm:$0xff]
        %v363 = vld [vmem:[%s331 + $0xe0] sm:$0xff]
        %v364 = vld [vmem:[%s331 + $0xe8] sm:$0xff]
        %v365 = vld [vmem:[%s331 + $0xf0] sm:$0xff]
        %v366 = vld [vmem:[%s331 + $0xf8] sm:$0xff]
        %v367 = vld [vmem:[%s1] sm:$0xf]
        %v368 = vld [vmem:[%s1 + $0x4] sm:$0xf]
        %v369 = vld [vmem:[%s1 + $0x8] sm:$0xf]
        %v370 = vld [vmem:[%s1 + $0xc] sm:$0xf]
        %v371 = vld [vmem:[%s2] sm:$0x1]
        %v372 = vpack.c.bf16 %v336, %v335
        %v373 = vpack.c.bf16 %v338, %v337
        %v374 = vpack.c.bf16 %v340, %v339
        %v375 = vpack.c.bf16 %v342, %v341
        %v376 = vpack.c.bf16 %v344, %v343
        %v377 = vpack.c.bf16 %v346, %v345
        %v378 = vpack.c.bf16 %v348, %v347
        %v379 = vpack.c.bf16 %v350, %v349
        %v380 = vpack.c.bf16 %v352, %v351
        %v381 = vpack.c.bf16 %v354, %v353
        %v382 = vpack.c.bf16 %v356, %v355
        %v383 = vpack.c.bf16 %v358, %v357
        %v384 = vpack.c.bf16 %v360, %v359
        %v385 = vpack.c.bf16 %v362, %v361
        %v386 = vpack.c.bf16 %v364, %v363
        %v387 = vpack.c.bf16 %v366, %v365
        %v389 = vlaneseq
        %v390 = vshrl.u32 %v389, 7
        %v391 = vsub.s32 0, %v390
        %v392 = vrot.slane %v371, %v391
        %v398 = vunpack.c.l.b16 %v367
        %v399 = vunpack.c.l.b16 %v368
        %v400 = vunpack.c.l.b16 %v369
        %v401 = vunpack.c.l.b16 %v370
        %v402 = vpack.c.b16 %v399, %v398
        %v403 = vpack.c.b16 %v401, %v400
        %vm406 = vcmask 261120
        %v408 = vsel %vm406, %v372, 0
        %v411 = vsel %vm406, %v373, 0
        %v414 = vsel %vm406, %v374, 0
        %v417 = vsel %vm406, %v375, 0
        %v420 = vsel %vm406, %v376, 0
        %v423 = vsel %vm406, %v377, 0
        %v426 = vsel %vm406, %v378, 0
        %v429 = vsel %vm406, %v379, 0
        %v432 = vsel %vm406, %v380, 0
        %v435 = vsel %vm406, %v381, 0
        %v438 = vsel %vm406, %v382, 0
        %v441 = vsel %vm406, %v383, 0
        %v444 = vsel %vm406, %v384, 0
        %v447 = vsel %vm406, %v385, 0
        %v450 = vsel %vm406, %v386, 0
        %v453 = vsel %vm406, %v387, 0
        %455 = vmatprep.subr.bf16.mxu0 0
        %456 = vmatpush1.bf16.msra.mxu0 %v402
        %457 = vmatprep.subr.bf16.mxu0 0
        %458 = vmatpush1.bf16.msra.mxu0 %v403
        %459 = vmatprep.subr.bf16.mxu0 0
        %460 = vmatpush1.bf16.msra.mxu0 0
        %461 = vmatprep.subr.bf16.mxu0 0
        %462 = vmatpush1.bf16.msra.mxu0 0
        %463 = vmatprep.subr.bf16.mxu0 0
        %464 = vmatpush1.bf16.msra.mxu0 0
        %465 = vmatprep.subr.bf16.mxu0 0
        %466 = vmatpush1.bf16.msra.mxu0 0
        %467 = vmatprep.subr.bf16.mxu0 0
        %468 = vmatpush1.bf16.msra.mxu0 0
        %469 = vmatprep.subr.bf16.mxu0 0
        %470 = vmatpush1.bf16.msra.mxu0 0
        %471 = vmatprep.subr.bf16.mxu0 0
        %472 = vmatpush1.bf16.msra.mxu0 0
        %473 = vmatprep.subr.bf16.mxu0 0
        %474 = vmatpush1.bf16.msra.mxu0 0
        %475 = vmatprep.subr.bf16.mxu0 0
        %476 = vmatpush1.bf16.msra.mxu0 0
        %477 = vmatprep.subr.bf16.mxu0 0
        %478 = vmatpush1.bf16.msra.mxu0 0
        %479 = vmatprep.subr.bf16.mxu0 0
        %480 = vmatpush1.bf16.msra.mxu0 0
        %481 = vmatprep.subr.bf16.mxu0 0
        %482 = vmatpush1.bf16.msra.mxu0 0
        %483 = vmatprep.subr.bf16.mxu0 0
        %484 = vmatpush1.bf16.msra.mxu0 0
        %485 = vmatprep.subr.bf16.mxu0 0
        %486 = vmatpush1.bf16.msra.mxu0 0
        %487 = vmatprep.mubr.bf16.mxu0 0
        %488 = vmatmul.mubr.bf16.gmra.mrb[0].mxu0 %v408
        %v489 = vpop.f32.mrb[0].mxu0
        %v490 = vadd.f32 %v392, %v489
        %v491 = vpop.f32.mrb[0].mxu0
        %v492 = vpop.f32.mrb[0].mxu0
        %v493 = vadd.f32 %v392, %v492
        %v494 = vpop.f32.mrb[0].mxu0
        %495 = vmatprep.mubr.bf16.mxu0 0
        %496 = vmatmul.mubr.bf16.gmra.mrb[0].mxu0 %v411
        %v497 = vpop.f32.mrb[0].mxu0
        %v498 = vadd.f32 %v392, %v497
        %v499 = vpop.f32.mrb[0].mxu0
        %v500 = vpop.f32.mrb[0].mxu0
        %v501 = vadd.f32 %v392, %v500
        %v502 = vpop.f32.mrb[0].mxu0
        %503 = vmatprep.mubr.bf16.mxu0 0
        %504 = vmatmul.mubr.bf16.gmra.mrb[0].mxu0 %v414
        %v505 = vpop.f32.mrb[0].mxu0
        %v506 = vadd.f32 %v392, %v505
        %v507 = vpop.f32.mrb[0].mxu0
        %v508 = vpop.f32.mrb[0].mxu0
        %v509 = vadd.f32 %v392, %v508
        %v510 = vpop.f32.mrb[0].mxu0
        %511 = vmatprep.mubr.bf16.mxu0 0
        %512 = vmatmul.mubr.bf16.gmra.mrb[0].mxu0 %v417
        %v513 = vpop.f32.mrb[0].mxu0
        %v514 = vadd.f32 %v392, %v513
        %v515 = vpop.f32.mrb[0].mxu0
        %v516 = vpop.f32.mrb[0].mxu0
        %v517 = vadd.f32 %v392, %v516
        %v518 = vpop.f32.mrb[0].mxu0
        %519 = vmatprep.mubr.bf16.mxu0 0
        %520 = vmatmul.mubr.bf16.gmra.mrb[0].mxu0 %v420
        %v521 = vpop.f32.mrb[0].mxu0
        %v522 = vadd.f32 %v392, %v521
        %v523 = vpop.f32.mrb[0].mxu0
        %v524 = vpop.f32.mrb[0].mxu0
        %v525 = vadd.f32 %v392, %v524
        %v526 = vpop.f32.mrb[0].mxu0
        %527 = vmatprep.mubr.bf16.mxu0 0
        %528 = vmatmul.mubr.bf16.gmra.mrb[0].mxu0 %v423
        %v529 = vpop.f32.mrb[0].mxu0
        %v530 = vadd.f32 %v392, %v529
        %v531 = vpop.f32.mrb[0].mxu0
        %v532 = vpop.f32.mrb[0].mxu0
        %v533 = vadd.f32 %v392, %v532
        %v534 = vpop.f32.mrb[0].mxu0
        %535 = vmatprep.mubr.bf16.mxu0 0
        %536 = vmatmul.mubr.bf16.gmra.mrb[0].mxu0 %v426
        %v537 = vpop.f32.mrb[0].mxu0
        %v538 = vadd.f32 %v392, %v537
        %v539 = vpop.f32.mrb[0].mxu0
        %v540 = vpop.f32.mrb[0].mxu0
        %v541 = vadd.f32 %v392, %v540
        %v542 = vpop.f32.mrb[0].mxu0
        %543 = vmatprep.mubr.bf16.mxu0 0
        %544 = vmatmul.mubr.bf16.gmra.mrb[0].mxu0 %v429
        %v545 = vpop.f32.mrb[0].mxu0
        %v546 = vadd.f32 %v392, %v545
        %v547 = vpop.f32.mrb[0].mxu0
        %v548 = vpop.f32.mrb[0].mxu0
        %v549 = vadd.f32 %v392, %v548
        %v550 = vpop.f32.mrb[0].mxu0
        %551 = vmatprep.mubr.bf16.mxu0 0
        %552 = vmatmul.mubr.bf16.gmra.mrb[0].mxu0 %v432
        %v553 = vpop.f32.mrb[0].mxu0
        %v554 = vadd.f32 %v392, %v553
        %v555 = vpop.f32.mrb[0].mxu0
        %v556 = vpop.f32.mrb[0].mxu0
        %v557 = vadd.f32 %v392, %v556
        %v558 = vpop.f32.mrb[0].mxu0
        %559 = vmatprep.mubr.bf16.mxu0 0
        %560 = vmatmul.mubr.bf16.gmra.mrb[0].mxu0 %v435
        %v561 = vpop.f32.mrb[0].mxu0
        %v562 = vadd.f32 %v392, %v561
        %v563 = vpop.f32.mrb[0].mxu0
        %v564 = vpop.f32.mrb[0].mxu0
        %v565 = vadd.f32 %v392, %v564
        %v566 = vpop.f32.mrb[0].mxu0
        %567 = vmatprep.mubr.bf16.mxu0 0
        %568 = vmatmul.mubr.bf16.gmra.mrb[0].mxu0 %v438
        %v569 = vpop.f32.mrb[0].mxu0
        %v570 = vadd.f32 %v392, %v569
        %v571 = vpop.f32.mrb[0].mxu0
        %v572 = vpop.f32.mrb[0].mxu0
        %v573 = vadd.f32 %v392, %v572
        %v574 = vpop.f32.mrb[0].mxu0
        %575 = vmatprep.mubr.bf16.mxu0 0
        %576 = vmatmul.mubr.bf16.gmra.mrb[0].mxu0 %v441
        %v577 = vpop.f32.mrb[0].mxu0
        %v578 = vadd.f32 %v392, %v577
        %v579 = vpop.f32.mrb[0].mxu0
        %v580 = vpop.f32.mrb[0].mxu0
        %v581 = vadd.f32 %v392, %v580
        %v582 = vpop.f32.mrb[0].mxu0
        %583 = vmatprep.mubr.bf16.mxu0 0
        %584 = vmatmul.mubr.bf16.gmra.mrb[0].mxu0 %v444
        %v585 = vpop.f32.mrb[0].mxu0
        %v586 = vadd.f32 %v392, %v585
        %v587 = vpop.f32.mrb[0].mxu0
        %v588 = vpop.f32.mrb[0].mxu0
        %v589 = vadd.f32 %v392, %v588
        %v590 = vpop.f32.mrb[0].mxu0
        %591 = vmatprep.mubr.bf16.mxu0 0
        %592 = vmatmul.mubr.bf16.gmra.mrb[0].mxu0 %v447
        %v593 = vpop.f32.mrb[0].mxu0
        %v594 = vadd.f32 %v392, %v593
        %v595 = vpop.f32.mrb[0].mxu0
        %v596 = vpop.f32.mrb[0].mxu0
        %v597 = vadd.f32 %v392, %v596
        %v598 = vpop.f32.mrb[0].mxu0
        %599 = vmatprep.mubr.bf16.mxu0 0
        %600 = vmatmul.mubr.bf16.gmra.mrb[0].mxu0 %v450
        %v601 = vpop.f32.mrb[0].mxu0
        %v602 = vadd.f32 %v392, %v601
        %v603 = vpop.f32.mrb[0].mxu0
        %v604 = vpop.f32.mrb[0].mxu0
        %v605 = vadd.f32 %v392, %v604
        %v606 = vpop.f32.mrb[0].mxu0
        %607 = vmatprep.mubr.bf16.mxu0 0
        %608 = vmatmul.mubr.bf16.gmra.mrb[0].mxu0 %v453
        %v609 = vpop.f32.mrb[0].mxu0
        %v610 = vadd.f32 %v392, %v609
        %v611 = vpop.f32.mrb[0].mxu0
        %v612 = vpop.f32.mrb[0].mxu0
        %v613 = vadd.f32 %v392, %v612
        %v614 = vpop.f32.mrb[0].mxu0
        %615 = vdwg.mxu0
        %v616 = vmax.f32 %v490, 0.0
        %v617 = vmax.f32 %v493, 0.0
        %v618 = vmax.f32 %v498, 0.0
        %v619 = vmax.f32 %v501, 0.0
        %v620 = vmax.f32 %v506, 0.0
        %v621 = vmax.f32 %v509, 0.0
        %v622 = vmax.f32 %v514, 0.0
        %v623 = vmax.f32 %v517, 0.0
        %v624 = vmax.f32 %v522, 0.0
        %v625 = vmax.f32 %v525, 0.0
        %v626 = vmax.f32 %v530, 0.0
        %v627 = vmax.f32 %v533, 0.0
        %v628 = vmax.f32 %v538, 0.0
        %v629 = vmax.f32 %v541, 0.0
        %v630 = vmax.f32 %v546, 0.0
        %v631 = vmax.f32 %v549, 0.0
        %v632 = vmax.f32 %v554, 0.0
        %v633 = vmax.f32 %v557, 0.0
        %v634 = vmax.f32 %v562, 0.0
        %v635 = vmax.f32 %v565, 0.0
        %v636 = vmax.f32 %v570, 0.0
        %v637 = vmax.f32 %v573, 0.0
        %v638 = vmax.f32 %v578, 0.0
        %v639 = vmax.f32 %v581, 0.0
        %v640 = vmax.f32 %v586, 0.0
        %v641 = vmax.f32 %v589, 0.0
        %v642 = vmax.f32 %v594, 0.0
        %v643 = vmax.f32 %v597, 0.0
        %v644 = vmax.f32 %v602, 0.0
        %v645 = vmax.f32 %v605, 0.0
        %v646 = vmax.f32 %v610, 0.0
        %v647 = vmax.f32 %v613, 0.0
        %v648 = vld [vmem:[%s3] sm:$0xff]
        %v649 = vld [vmem:[%s3 + $0x8] sm:$0xff]
        %v650 = vld [vmem:[%s3 + $0x10] sm:$0xff]
        %v651 = vld [vmem:[%s3 + $0x18] sm:$0xff]
        %v652 = vld [vmem:[%s3 + $0x20] sm:$0xff]
        %v653 = vld [vmem:[%s3 + $0x28] sm:$0xff]
        %v654 = vld [vmem:[%s3 + $0x30] sm:$0xff]
        %v655 = vld [vmem:[%s3 + $0x38] sm:$0xff]
        %v656 = vld [vmem:[%s3 + $0x40] sm:$0xff]
        %v657 = vld [vmem:[%s3 + $0x48] sm:$0xff]
        %v658 = vld [vmem:[%s3 + $0x50] sm:$0xff]
        %v659 = vld [vmem:[%s3 + $0x58] sm:$0xff]
        %v660 = vld [vmem:[%s3 + $0x60] sm:$0xff]
        %v661 = vld [vmem:[%s3 + $0x68] sm:$0xff]
        %v662 = vld [vmem:[%s3 + $0x70] sm:$0xff]
        %v663 = vld [vmem:[%s3 + $0x78] sm:$0xff]
        %v664 = vld [vmem:[%s4] sm:$0x3]
        %v665 = vpack.c.bf16 %v617, %v616
        %v666 = vpack.c.bf16 %v619, %v618
        %v667 = vpack.c.bf16 %v621, %v620
        %v668 = vpack.c.bf16 %v623, %v622
        %v669 = vpack.c.bf16 %v625, %v624
        %v670 = vpack.c.bf16 %v627, %v626
        %v671 = vpack.c.bf16 %v629, %v628
        %v672 = vpack.c.bf16 %v631, %v630
        %v673 = vpack.c.bf16 %v633, %v632
        %v674 = vpack.c.bf16 %v635, %v634
        %v675 = vpack.c.bf16 %v637, %v636
        %v676 = vpack.c.bf16 %v639, %v638
        %v677 = vpack.c.bf16 %v641, %v640
        %v678 = vpack.c.bf16 %v643, %v642
        %v679 = vpack.c.bf16 %v645, %v644
        %v680 = vpack.c.bf16 %v647, %v646
        %v682 = vlaneseq
        %v683 = vshrl.u32 %v682, 7
        %v684 = vsub.s32 0, %v683
        %v685 = vrot.slane %v664, %v684
        %v686 = vlaneseq
        %v687 = vshrl.u32 %v686, 7
        %v688 = vsub.s32 1, %v687
        %v689 = vrot.slane %v664, %v688
        %v708 = vunpack.c.l.b16 %v648
        %v709 = vunpack.c.h.b16 %v648
        %v710 = vunpack.c.l.b16 %v649
        %v711 = vunpack.c.h.b16 %v649
        %v712 = vunpack.c.l.b16 %v650
        %v713 = vunpack.c.h.b16 %v650
        %v714 = vunpack.c.l.b16 %v651
        %v715 = vunpack.c.h.b16 %v651
        %v716 = vunpack.c.l.b16 %v652
        %v717 = vunpack.c.h.b16 %v652
        %v718 = vunpack.c.l.b16 %v653
        %v719 = vunpack.c.h.b16 %v653
        %v720 = vunpack.c.l.b16 %v654
        %v721 = vunpack.c.h.b16 %v654
        %v722 = vunpack.c.l.b16 %v655
        %v723 = vunpack.c.h.b16 %v655
        %v724 = vunpack.c.l.b16 %v656
        %v725 = vunpack.c.h.b16 %v656
        %v726 = vunpack.c.l.b16 %v657
        %v727 = vunpack.c.h.b16 %v657
        %v728 = vunpack.c.l.b16 %v658
        %v729 = vunpack.c.h.b16 %v658
        %v730 = vunpack.c.l.b16 %v659
        %v731 = vunpack.c.h.b16 %v659
        %v732 = vunpack.c.l.b16 %v660
        %v733 = vunpack.c.h.b16 %v660
        %v734 = vunpack.c.l.b16 %v661
        %v735 = vunpack.c.h.b16 %v661
        %v736 = vunpack.c.l.b16 %v662
        %v737 = vunpack.c.h.b16 %v662
        %v738 = vunpack.c.l.b16 %v663
        %v739 = vunpack.c.h.b16 %v663
        %v740 = vpack.c.b16 %v710, %v708
        %v741 = vpack.c.b16 %v711, %v709
        %v742 = vpack.c.b16 %v714, %v712
        %v743 = vpack.c.b16 %v715, %v713
        %v744 = vpack.c.b16 %v718, %v716
        %v745 = vpack.c.b16 %v719, %v717
        %v746 = vpack.c.b16 %v722, %v720
        %v747 = vpack.c.b16 %v723, %v721
        %v748 = vpack.c.b16 %v726, %v724
        %v749 = vpack.c.b16 %v727, %v725
        %v750 = vpack.c.b16 %v730, %v728
        %v751 = vpack.c.b16 %v731, %v729
        %v752 = vpack.c.b16 %v734, %v732
        %v753 = vpack.c.b16 %v735, %v733
        %v754 = vpack.c.b16 %v738, %v736
        %v755 = vpack.c.b16 %v739, %v737
        %772 = vmatprep.subr.bf16.mxu0 %v741
        %773 = vmatpush1.bf16.msra.mxu0 %v740
        %774 = vmatprep.subr.bf16.mxu0 %v743
        %775 = vmatpush1.bf16.msra.mxu0 %v742
        %776 = vmatprep.subr.bf16.mxu0 %v745
        %777 = vmatpush1.bf16.msra.mxu0 %v744
        %778 = vmatprep.subr.bf16.mxu0 %v747
        %779 = vmatpush1.bf16.msra.mxu0 %v746
        %780 = vmatprep.subr.bf16.mxu0 %v749
        %781 = vmatpush1.bf16.msra.mxu0 %v748
        %782 = vmatprep.subr.bf16.mxu0 %v751
        %783 = vmatpush1.bf16.msra.mxu0 %v750
        %784 = vmatprep.subr.bf16.mxu0 %v753
        %785 = vmatpush1.bf16.msra.mxu0 %v752
        %786 = vmatprep.subr.bf16.mxu0 %v755
        %787 = vmatpush1.bf16.msra.mxu0 %v754
        %788 = vmatprep.subr.bf16.mxu0 0
        %789 = vmatpush1.bf16.msra.mxu0 0
        %790 = vmatprep.subr.bf16.mxu0 0
        %791 = vmatpush1.bf16.msra.mxu0 0
        %792 = vmatprep.subr.bf16.mxu0 0
        %793 = vmatpush1.bf16.msra.mxu0 0
        %794 = vmatprep.subr.bf16.mxu0 0
        %795 = vmatpush1.bf16.msra.mxu0 0
        %796 = vmatprep.subr.bf16.mxu0 0
        %797 = vmatpush1.bf16.msra.mxu0 0
        %798 = vmatprep.subr.bf16.mxu0 0
        %799 = vmatpush1.bf16.msra.mxu0 0
        %800 = vmatprep.subr.bf16.mxu0 0
        %801 = vmatpush1.bf16.msra.mxu0 0
        %802 = vmatprep.subr.bf16.mxu0 0
        %803 = vmatpush1.bf16.msra.mxu0 0
        %804 = vmatprep.mubr.bf16.mxu0 0
        %805 = vmatmul.mubr.bf16.gmra.mrb[0].mxu0 %v665
        %v806 = vpop.f32.mrb[0].mxu0
        %v807 = vadd.f32 %v685, %v806
        %v808 = vpop.f32.mrb[0].mxu0
        %v809 = vadd.f32 %v689, %v808
        %v810 = vpop.f32.mrb[0].mxu0
        %v811 = vadd.f32 %v685, %v810
        %v812 = vpop.f32.mrb[0].mxu0
        %v813 = vadd.f32 %v689, %v812
        %814 = vmatprep.mubr.bf16.mxu0 0
        %815 = vmatmul.mubr.bf16.gmra.mrb[0].mxu0 %v666
        %v816 = vpop.f32.mrb[0].mxu0
        %v817 = vadd.f32 %v685, %v816
        %v818 = vpop.f32.mrb[0].mxu0
        %v819 = vadd.f32 %v689, %v818
        %v820 = vpop.f32.mrb[0].mxu0
        %v821 = vadd.f32 %v685, %v820
        %v822 = vpop.f32.mrb[0].mxu0
        %v823 = vadd.f32 %v689, %v822
        %824 = vmatprep.mubr.bf16.mxu0 0
        %825 = vmatmul.mubr.bf16.gmra.mrb[0].mxu0 %v667
        %v826 = vpop.f32.mrb[0].mxu0
        %v827 = vadd.f32 %v685, %v826
        %v828 = vpop.f32.mrb[0].mxu0
        %v829 = vadd.f32 %v689, %v828
        %v830 = vpop.f32.mrb[0].mxu0
        %v831 = vadd.f32 %v685, %v830
        %v832 = vpop.f32.mrb[0].mxu0
        %v833 = vadd.f32 %v689, %v832
        %834 = vmatprep.mubr.bf16.mxu0 0
        %835 = vmatmul.mubr.bf16.gmra.mrb[0].mxu0 %v668
        %v836 = vpop.f32.mrb[0].mxu0
        %v837 = vadd.f32 %v685, %v836
        %v838 = vpop.f32.mrb[0].mxu0
        %v839 = vadd.f32 %v689, %v838
        %v840 = vpop.f32.mrb[0].mxu0
        %v841 = vadd.f32 %v685, %v840
        %v842 = vpop.f32.mrb[0].mxu0
        %v843 = vadd.f32 %v689, %v842
        %844 = vmatprep.mubr.bf16.mxu0 0
        %845 = vmatmul.mubr.bf16.gmra.mrb[0].mxu0 %v669
        %v846 = vpop.f32.mrb[0].mxu0
        %v847 = vadd.f32 %v685, %v846
        %v848 = vpop.f32.mrb[0].mxu0
        %v849 = vadd.f32 %v689, %v848
        %v850 = vpop.f32.mrb[0].mxu0
        %v851 = vadd.f32 %v685, %v850
        %v852 = vpop.f32.mrb[0].mxu0
        %v853 = vadd.f32 %v689, %v852
        %854 = vmatprep.mubr.bf16.mxu0 0
        %855 = vmatmul.mubr.bf16.gmra.mrb[0].mxu0 %v670
        %v856 = vpop.f32.mrb[0].mxu0
        %v857 = vadd.f32 %v685, %v856
        %v858 = vpop.f32.mrb[0].mxu0
        %v859 = vadd.f32 %v689, %v858
        %v860 = vpop.f32.mrb[0].mxu0
        %v861 = vadd.f32 %v685, %v860
        %v862 = vpop.f32.mrb[0].mxu0
        %v863 = vadd.f32 %v689, %v862
        %864 = vmatprep.mubr.bf16.mxu0 0
        %865 = vmatmul.mubr.bf16.gmra.mrb[0].mxu0 %v671
        %v866 = vpop.f32.mrb[0].mxu0
        %v867 = vadd.f32 %v685, %v866
        %v868 = vpop.f32.mrb[0].mxu0
        %v869 = vadd.f32 %v689, %v868
        %v870 = vpop.f32.mrb[0].mxu0
        %v871 = vadd.f32 %v685, %v870
        %v872 = vpop.f32.mrb[0].mxu0
        %v873 = vadd.f32 %v689, %v872
        %874 = vmatprep.mubr.bf16.mxu0 0
        %875 = vmatmul.mubr.bf16.gmra.mrb[0].mxu0 %v672
        %v876 = vpop.f32.mrb[0].mxu0
        %v877 = vadd.f32 %v685, %v876
        %v878 = vpop.f32.mrb[0].mxu0
        %v879 = vadd.f32 %v689, %v878
        %v880 = vpop.f32.mrb[0].mxu0
        %v881 = vadd.f32 %v685, %v880
        %v882 = vpop.f32.mrb[0].mxu0
        %v883 = vadd.f32 %v689, %v882
        %884 = vmatprep.mubr.bf16.mxu0 0
        %885 = vmatmul.mubr.bf16.gmra.mrb[0].mxu0 %v673
        %v886 = vpop.f32.mrb[0].mxu0
        %v887 = vadd.f32 %v685, %v886
        %v888 = vpop.f32.mrb[0].mxu0
        %v889 = vadd.f32 %v689, %v888
        %v890 = vpop.f32.mrb[0].mxu0
        %v891 = vadd.f32 %v685, %v890
        %v892 = vpop.f32.mrb[0].mxu0
        %v893 = vadd.f32 %v689, %v892
        %894 = vmatprep.mubr.bf16.mxu0 0
        %895 = vmatmul.mubr.bf16.gmra.mrb[0].mxu0 %v674
        %v896 = vpop.f32.mrb[0].mxu0
        %v897 = vadd.f32 %v685, %v896
        %v898 = vpop.f32.mrb[0].mxu0
        %v899 = vadd.f32 %v689, %v898
        %v900 = vpop.f32.mrb[0].mxu0
        %v901 = vadd.f32 %v685, %v900
        %v902 = vpop.f32.mrb[0].mxu0
        %v903 = vadd.f32 %v689, %v902
        %904 = vmatprep.mubr.bf16.mxu0 0
        %905 = vmatmul.mubr.bf16.gmra.mrb[0].mxu0 %v675
        %v906 = vpop.f32.mrb[0].mxu0
        %v907 = vadd.f32 %v685, %v906
        %v908 = vpop.f32.mrb[0].mxu0
        %v909 = vadd.f32 %v689, %v908
        %v910 = vpop.f32.mrb[0].mxu0
        %v911 = vadd.f32 %v685, %v910
        %v912 = vpop.f32.mrb[0].mxu0
        %v913 = vadd.f32 %v689, %v912
        %914 = vmatprep.mubr.bf16.mxu0 0
        %915 = vmatmul.mubr.bf16.gmra.mrb[0].mxu0 %v676
        %v916 = vpop.f32.mrb[0].mxu0
        %v917 = vadd.f32 %v685, %v916
        %v918 = vpop.f32.mrb[0].mxu0
        %v919 = vadd.f32 %v689, %v918
        %v920 = vpop.f32.mrb[0].mxu0
        %v921 = vadd.f32 %v685, %v920
        %v922 = vpop.f32.mrb[0].mxu0
        %v923 = vadd.f32 %v689, %v922
        %924 = vmatprep.mubr.bf16.mxu0 0
        %925 = vmatmul.mubr.bf16.gmra.mrb[0].mxu0 %v677
        %v926 = vpop.f32.mrb[0].mxu0
        %v927 = vadd.f32 %v685, %v926
        %v928 = vpop.f32.mrb[0].mxu0
        %v929 = vadd.f32 %v689, %v928
        %v930 = vpop.f32.mrb[0].mxu0
        %v931 = vadd.f32 %v685, %v930
        %v932 = vpop.f32.mrb[0].mxu0
        %v933 = vadd.f32 %v689, %v932
        %934 = vmatprep.mubr.bf16.mxu0 0
        %935 = vmatmul.mubr.bf16.gmra.mrb[0].mxu0 %v678
        %v936 = vpop.f32.mrb[0].mxu0
        %v937 = vadd.f32 %v685, %v936
        %v938 = vpop.f32.mrb[0].mxu0
        %v939 = vadd.f32 %v689, %v938
        %v940 = vpop.f32.mrb[0].mxu0
        %v941 = vadd.f32 %v685, %v940
        %v942 = vpop.f32.mrb[0].mxu0
        %v943 = vadd.f32 %v689, %v942
        %944 = vmatprep.mubr.bf16.mxu0 0
        %945 = vmatmul.mubr.bf16.gmra.mrb[0].mxu0 %v679
        %v946 = vpop.f32.mrb[0].mxu0
        %v947 = vadd.f32 %v685, %v946
        %v948 = vpop.f32.mrb[0].mxu0
        %v949 = vadd.f32 %v689, %v948
        %v950 = vpop.f32.mrb[0].mxu0
        %v951 = vadd.f32 %v685, %v950
        %v952 = vpop.f32.mrb[0].mxu0
        %v953 = vadd.f32 %v689, %v952
        %954 = vmatprep.mubr.bf16.mxu0 0
        %955 = vmatmul.mubr.bf16.gmra.mrb[0].mxu0 %v680
        %v956 = vpop.f32.mrb[0].mxu0
        %v957 = vadd.f32 %v685, %v956
        %v958 = vpop.f32.mrb[0].mxu0
        %v959 = vadd.f32 %v689, %v958
        %v960 = vpop.f32.mrb[0].mxu0
        %v961 = vadd.f32 %v685, %v960
        %v962 = vpop.f32.mrb[0].mxu0
        %v963 = vadd.f32 %v689, %v962
        %964 = vdwg.mxu0
        %v965 = vmax.f32 %v807, 0.0
        %v966 = vmax.f32 %v809, 0.0
        %v967 = vmax.f32 %v811, 0.0
        %v968 = vmax.f32 %v813, 0.0
        %v969 = vmax.f32 %v817, 0.0
        %v970 = vmax.f32 %v819, 0.0
        %v971 = vmax.f32 %v821, 0.0
        %v972 = vmax.f32 %v823, 0.0
        %v973 = vmax.f32 %v827, 0.0
        %v974 = vmax.f32 %v829, 0.0
        %v975 = vmax.f32 %v831, 0.0
        %v976 = vmax.f32 %v833, 0.0
        %v977 = vmax.f32 %v837, 0.0
        %v978 = vmax.f32 %v839, 0.0
        %v979 = vmax.f32 %v841, 0.0
        %v980 = vmax.f32 %v843, 0.0
        %v981 = vmax.f32 %v847, 0.0
        %v982 = vmax.f32 %v849, 0.0
        %v983 = vmax.f32 %v851, 0.0
        %v984 = vmax.f32 %v853, 0.0
        %v985 = vmax.f32 %v857, 0.0
        %v986 = vmax.f32 %v859, 0.0
        %v987 = vmax.f32 %v861, 0.0
        %v988 = vmax.f32 %v863, 0.0
        %v989 = vmax.f32 %v867, 0.0
        %v990 = vmax.f32 %v869, 0.0
        %v991 = vmax.f32 %v871, 0.0
        %v992 = vmax.f32 %v873, 0.0
        %v993 = vmax.f32 %v877, 0.0
        %v994 = vmax.f32 %v879, 0.0
        %v995 = vmax.f32 %v881, 0.0
        %v996 = vmax.f32 %v883, 0.0
        %v997 = vmax.f32 %v887, 0.0
        %v998 = vmax.f32 %v889, 0.0
        %v999 = vmax.f32 %v891, 0.0
        %v1000 = vmax.f32 %v893, 0.0
        %v1001 = vmax.f32 %v897, 0.0
        %v1002 = vmax.f32 %v899, 0.0
        %v1003 = vmax.f32 %v901, 0.0
        %v1004 = vmax.f32 %v903, 0.0
        %v1005 = vmax.f32 %v907, 0.0
        %v1006 = vmax.f32 %v909, 0.0
        %v1007 = vmax.f32 %v911, 0.0
        %v1008 = vmax.f32 %v913, 0.0
        %v1009 = vmax.f32 %v917, 0.0
        %v1010 = vmax.f32 %v919, 0.0
        %v1011 = vmax.f32 %v921, 0.0
        %v1012 = vmax.f32 %v923, 0.0
        %v1013 = vmax.f32 %v927, 0.0
        %v1014 = vmax.f32 %v929, 0.0
        %v1015 = vmax.f32 %v931, 0.0
        %v1016 = vmax.f32 %v933, 0.0
        %v1017 = vmax.f32 %v937, 0.0
        %v1018 = vmax.f32 %v939, 0.0
        %v1019 = vmax.f32 %v941, 0.0
        %v1020 = vmax.f32 %v943, 0.0
        %v1021 = vmax.f32 %v947, 0.0
        %v1022 = vmax.f32 %v949, 0.0
        %v1023 = vmax.f32 %v951, 0.0
        %v1024 = vmax.f32 %v953, 0.0
        %v1025 = vmax.f32 %v957, 0.0
        %v1026 = vmax.f32 %v959, 0.0
        %v1027 = vmax.f32 %v961, 0.0
        %v1028 = vmax.f32 %v963, 0.0
        %v1029 = vld [vmem:[%s5] sm:$0xf]
        %v1030 = vld [vmem:[%s5 + $0x4] sm:$0xf]
        %v1031 = vld [vmem:[%s5 + $0x8] sm:$0xf]
        %v1032 = vld [vmem:[%s5 + $0xc] sm:$0xf]
        %v1033 = vld [vmem:[%s5 + $0x10] sm:$0xf]
        %v1034 = vld [vmem:[%s5 + $0x14] sm:$0xf]
        %v1035 = vld [vmem:[%s5 + $0x18] sm:$0xf]
        %v1036 = vld [vmem:[%s5 + $0x1c] sm:$0xf]
        %v1037 = vld [vmem:[%s5 + $0x20] sm:$0xf]
        %v1038 = vld [vmem:[%s5 + $0x24] sm:$0xf]
        %v1039 = vld [vmem:[%s5 + $0x28] sm:$0xf]
        %v1040 = vld [vmem:[%s5 + $0x2c] sm:$0xf]
        %v1041 = vld [vmem:[%s5 + $0x30] sm:$0xf]
        %v1042 = vld [vmem:[%s5 + $0x34] sm:$0xf]
        %v1043 = vld [vmem:[%s5 + $0x38] sm:$0xf]
        %v1044 = vld [vmem:[%s5 + $0x3c] sm:$0xf]
        %v1045 = vld [vmem:[%s5 + $0x40] sm:$0xf]
        %v1046 = vld [vmem:[%s5 + $0x44] sm:$0xf]
        %v1047 = vld [vmem:[%s5 + $0x48] sm:$0xf]
        %v1048 = vld [vmem:[%s5 + $0x4c] sm:$0xf]
        %v1049 = vld [vmem:[%s5 + $0x50] sm:$0xf]
        %v1050 = vld [vmem:[%s5 + $0x54] sm:$0xf]
        %v1051 = vld [vmem:[%s5 + $0x58] sm:$0xf]
        %v1052 = vld [vmem:[%s5 + $0x5c] sm:$0xf]
        %v1053 = vld [vmem:[%s5 + $0x60] sm:$0xf]
        %v1054 = vld [vmem:[%s5 + $0x64] sm:$0xf]
        %v1055 = vld [vmem:[%s5 + $0x68] sm:$0xf]
        %v1056 = vld [vmem:[%s5 + $0x6c] sm:$0xf]
        %v1057 = vld [vmem:[%s5 + $0x70] sm:$0xf]
        %v1058 = vld [vmem:[%s5 + $0x74] sm:$0xf]
        %v1059 = vld [vmem:[%s5 + $0x78] sm:$0xf]
        %v1060 = vld [vmem:[%s5 + $0x7c] sm:$0xf]
        %v1061 = vld [vmem:[%s6] sm:$0x1]
        %v1062 = vpack.c.bf16 %v967, %v965
        %v1063 = vpack.c.bf16 %v968, %v966
        %v1064 = vpack.c.bf16 %v971, %v969
        %v1065 = vpack.c.bf16 %v972, %v970
        %v1066 = vpack.c.bf16 %v975, %v973
        %v1067 = vpack.c.bf16 %v976, %v974
        %v1068 = vpack.c.bf16 %v979, %v977
        %v1069 = vpack.c.bf16 %v980, %v978
        %v1070 = vpack.c.bf16 %v983, %v981
        %v1071 = vpack.c.bf16 %v984, %v982
        %v1072 = vpack.c.bf16 %v987, %v985
        %v1073 = vpack.c.bf16 %v988, %v986
        %v1074 = vpack.c.bf16 %v991, %v989
        %v1075 = vpack.c.bf16 %v992, %v990
        %v1076 = vpack.c.bf16 %v995, %v993
        %v1077 = vpack.c.bf16 %v996, %v994
        %v1078 = vpack.c.bf16 %v999, %v997
        %v1079 = vpack.c.bf16 %v1000, %v998
        %v1080 = vpack.c.bf16 %v1003, %v1001
        %v1081 = vpack.c.bf16 %v1004, %v1002
        %v1082 = vpack.c.bf16 %v1007, %v1005
        %v1083 = vpack.c.bf16 %v1008, %v1006
        %v1084 = vpack.c.bf16 %v1011, %v1009
        %v1085 = vpack.c.bf16 %v1012, %v1010
        %v1086 = vpack.c.bf16 %v1015, %v1013
        %v1087 = vpack.c.bf16 %v1016, %v1014
        %v1088 = vpack.c.bf16 %v1019, %v1017
        %v1089 = vpack.c.bf16 %v1020, %v1018
        %v1090 = vpack.c.bf16 %v1023, %v1021
        %v1091 = vpack.c.bf16 %v1024, %v1022
        %v1092 = vpack.c.bf16 %v1027, %v1025
        %v1093 = vpack.c.bf16 %v1028, %v1026
        %v1095 = vlaneseq
        %v1096 = vshrl.u32 %v1095, 7
        %v1097 = vsub.s32 0, %v1096
        %v1098 = vrot.slane %v1061, %v1097
        %v1132 = vunpack.c.l.b16 %v1029
        %v1133 = vunpack.c.l.b16 %v1030
        %v1134 = vunpack.c.l.b16 %v1031
        %v1135 = vunpack.c.l.b16 %v1032
        %v1136 = vunpack.c.l.b16 %v1033
        %v1137 = vunpack.c.l.b16 %v1034
        %v1138 = vunpack.c.l.b16 %v1035
        %v1139 = vunpack.c.l.b16 %v1036
        %v1140 = vunpack.c.l.b16 %v1037
        %v1141 = vunpack.c.l.b16 %v1038
        %v1142 = vunpack.c.l.b16 %v1039
        %v1143 = vunpack.c.l.b16 %v1040
        %v1144 = vunpack.c.l.b16 %v1041
        %v1145 = vunpack.c.l.b16 %v1042
        %v1146 = vunpack.c.l.b16 %v1043
        %v1147 = vunpack.c.l.b16 %v1044
        %v1148 = vunpack.c.l.b16 %v1045
        %v1149 = vunpack.c.l.b16 %v1046
        %v1150 = vunpack.c.l.b16 %v1047
        %v1151 = vunpack.c.l.b16 %v1048
        %v1152 = vunpack.c.l.b16 %v1049
        %v1153 = vunpack.c.l.b16 %v1050
        %v1154 = vunpack.c.l.b16 %v1051
        %v1155 = vunpack.c.l.b16 %v1052
        %v1156 = vunpack.c.l.b16 %v1053
        %v1157 = vunpack.c.l.b16 %v1054
        %v1158 = vunpack.c.l.b16 %v1055
        %v1159 = vunpack.c.l.b16 %v1056
        %v1160 = vunpack.c.l.b16 %v1057
        %v1161 = vunpack.c.l.b16 %v1058
        %v1162 = vunpack.c.l.b16 %v1059
        %v1163 = vunpack.c.l.b16 %v1060
        %v1164 = vpack.c.b16 %v1133, %v1132
        %v1165 = vpack.c.b16 %v1135, %v1134
        %v1166 = vpack.c.b16 %v1137, %v1136
        %v1167 = vpack.c.b16 %v1139, %v1138
        %v1168 = vpack.c.b16 %v1141, %v1140
        %v1169 = vpack.c.b16 %v1143, %v1142
        %v1170 = vpack.c.b16 %v1145, %v1144
        %v1171 = vpack.c.b16 %v1147, %v1146
        %v1172 = vpack.c.b16 %v1149, %v1148
        %v1173 = vpack.c.b16 %v1151, %v1150
        %v1174 = vpack.c.b16 %v1153, %v1152
        %v1175 = vpack.c.b16 %v1155, %v1154
        %v1176 = vpack.c.b16 %v1157, %v1156
        %v1177 = vpack.c.b16 %v1159, %v1158
        %v1178 = vpack.c.b16 %v1161, %v1160
        %v1179 = vpack.c.b16 %v1163, %v1162
        %1196 = vmatprep.subr.bf16.mxu0 0
        %1197 = vmatpush1.bf16.msra.mxu0 %v1164
        %1198 = vmatprep.subr.bf16.mxu0 0
        %1199 = vmatpush1.bf16.msra.mxu0 %v1165
        %1200 = vmatprep.subr.bf16.mxu0 0
        %1201 = vmatpush1.bf16.msra.mxu0 %v1166
        %1202 = vmatprep.subr.bf16.mxu0 0
        %1203 = vmatpush1.bf16.msra.mxu0 %v1167
        %1204 = vmatprep.subr.bf16.mxu0 0
        %1205 = vmatpush1.bf16.msra.mxu0 %v1168
        %1206 = vmatprep.subr.bf16.mxu0 0
        %1207 = vmatpush1.bf16.msra.mxu0 %v1169
        %1208 = vmatprep.subr.bf16.mxu0 0
        %1209 = vmatpush1.bf16.msra.mxu0 %v1170
        %1210 = vmatprep.subr.bf16.mxu0 0
        %1211 = vmatpush1.bf16.msra.mxu0 %v1171
        %1212 = vmatprep.subr.bf16.mxu0 0
        %1213 = vmatpush1.bf16.msra.mxu0 %v1172
        %1214 = vmatprep.subr.bf16.mxu0 0
        %1215 = vmatpush1.bf16.msra.mxu0 %v1173
        %1216 = vmatprep.subr.bf16.mxu0 0
        %1217 = vmatpush1.bf16.msra.mxu0 %v1174
        %1218 = vmatprep.subr.bf16.mxu0 0
        %1219 = vmatpush1.bf16.msra.mxu0 %v1175
        %1220 = vmatprep.subr.bf16.mxu0 0
        %1221 = vmatpush1.bf16.msra.mxu0 %v1176
        %1222 = vmatprep.subr.bf16.mxu0 0
        %1223 = vmatpush1.bf16.msra.mxu0 %v1177
        %1224 = vmatprep.subr.bf16.mxu0 0
        %1225 = vmatpush1.bf16.msra.mxu0 %v1178
        %1226 = vmatprep.subr.bf16.mxu0 0
        %1227 = vmatpush1.bf16.msra.mxu0 %v1179
        %1228 = vmatprep.mubr.bf16.mxu0 %v1063
        %1229 = vmatmul.mubr.bf16.gmra.mrb[0].mxu0 %v1062
        %v1230 = vpop.f32.mrb[0].mxu0
        %v1231 = vadd.f32 %v1098, %v1230
        %v1232 = vpop.f32.mrb[0].mxu0
        %v1233 = vpop.f32.mrb[0].mxu0
        %v1234 = vadd.f32 %v1098, %v1233
        %v1235 = vpop.f32.mrb[0].mxu0
        %1236 = vmatprep.mubr.bf16.mxu0 %v1065
        %1237 = vmatmul.mubr.bf16.gmra.mrb[0].mxu0 %v1064
        %v1238 = vpop.f32.mrb[0].mxu0
        %v1239 = vadd.f32 %v1098, %v1238
        %v1240 = vpop.f32.mrb[0].mxu0
        %v1241 = vpop.f32.mrb[0].mxu0
        %v1242 = vadd.f32 %v1098, %v1241
        %v1243 = vpop.f32.mrb[0].mxu0
        %1244 = vmatprep.mubr.bf16.mxu0 %v1067
        %1245 = vmatmul.mubr.bf16.gmra.mrb[0].mxu0 %v1066
        %v1246 = vpop.f32.mrb[0].mxu0
        %v1247 = vadd.f32 %v1098, %v1246
        %v1248 = vpop.f32.mrb[0].mxu0
        %v1249 = vpop.f32.mrb[0].mxu0
        %v1250 = vadd.f32 %v1098, %v1249
        %v1251 = vpop.f32.mrb[0].mxu0
        %1252 = vmatprep.mubr.bf16.mxu0 %v1069
        %1253 = vmatmul.mubr.bf16.gmra.mrb[0].mxu0 %v1068
        %v1254 = vpop.f32.mrb[0].mxu0
        %v1255 = vadd.f32 %v1098, %v1254
        %v1256 = vpop.f32.mrb[0].mxu0
        %v1257 = vpop.f32.mrb[0].mxu0
        %v1258 = vadd.f32 %v1098, %v1257
        %v1259 = vpop.f32.mrb[0].mxu0
        %1260 = vmatprep.mubr.bf16.mxu0 %v1071
        %1261 = vmatmul.mubr.bf16.gmra.mrb[0].mxu0 %v1070
        %v1262 = vpop.f32.mrb[0].mxu0
        %v1263 = vadd.f32 %v1098, %v1262
        %v1264 = vpop.f32.mrb[0].mxu0
        %v1265 = vpop.f32.mrb[0].mxu0
        %v1266 = vadd.f32 %v1098, %v1265
        %v1267 = vpop.f32.mrb[0].mxu0
        %1268 = vmatprep.mubr.bf16.mxu0 %v1073
        %1269 = vmatmul.mubr.bf16.gmra.mrb[0].mxu0 %v1072
        %v1270 = vpop.f32.mrb[0].mxu0
        %v1271 = vadd.f32 %v1098, %v1270
        %v1272 = vpop.f32.mrb[0].mxu0
        %v1273 = vpop.f32.mrb[0].mxu0
        %v1274 = vadd.f32 %v1098, %v1273
        %v1275 = vpop.f32.mrb[0].mxu0
        %1276 = vmatprep.mubr.bf16.mxu0 %v1075
        %1277 = vmatmul.mubr.bf16.gmra.mrb[0].mxu0 %v1074
        %v1278 = vpop.f32.mrb[0].mxu0
        %v1279 = vadd.f32 %v1098, %v1278
        %v1280 = vpop.f32.mrb[0].mxu0
        %v1281 = vpop.f32.mrb[0].mxu0
        %v1282 = vadd.f32 %v1098, %v1281
        %v1283 = vpop.f32.mrb[0].mxu0
        %1284 = vmatprep.mubr.bf16.mxu0 %v1077
        %1285 = vmatmul.mubr.bf16.gmra.mrb[0].mxu0 %v1076
        %v1286 = vpop.f32.mrb[0].mxu0
        %v1287 = vadd.f32 %v1098, %v1286
        %v1288 = vpop.f32.mrb[0].mxu0
        %v1289 = vpop.f32.mrb[0].mxu0
        %v1290 = vadd.f32 %v1098, %v1289
        %v1291 = vpop.f32.mrb[0].mxu0
        %1292 = vmatprep.mubr.bf16.mxu0 %v1079
        %1293 = vmatmul.mubr.bf16.gmra.mrb[0].mxu0 %v1078
        %v1294 = vpop.f32.mrb[0].mxu0
        %v1295 = vadd.f32 %v1098, %v1294
        %v1296 = vpop.f32.mrb[0].mxu0
        %v1297 = vpop.f32.mrb[0].mxu0
        %v1298 = vadd.f32 %v1098, %v1297
        %v1299 = vpop.f32.mrb[0].mxu0
        %1300 = vmatprep.mubr.bf16.mxu0 %v1081
        %1301 = vmatmul.mubr.bf16.gmra.mrb[0].mxu0 %v1080
        %v1302 = vpop.f32.mrb[0].mxu0
        %v1303 = vadd.f32 %v1098, %v1302
        %v1304 = vpop.f32.mrb[0].mxu0
        %v1305 = vpop.f32.mrb[0].mxu0
        %v1306 = vadd.f32 %v1098, %v1305
        %v1307 = vpop.f32.mrb[0].mxu0
        %1308 = vmatprep.mubr.bf16.mxu0 %v1083
        %1309 = vmatmul.mubr.bf16.gmra.mrb[0].mxu0 %v1082
        %v1310 = vpop.f32.mrb[0].mxu0
        %v1311 = vadd.f32 %v1098, %v1310
        %v1312 = vpop.f32.mrb[0].mxu0
        %v1313 = vpop.f32.mrb[0].mxu0
        %v1314 = vadd.f32 %v1098, %v1313
        %v1315 = vpop.f32.mrb[0].mxu0
        %1316 = vmatprep.mubr.bf16.mxu0 %v1085
        %1317 = vmatmul.mubr.bf16.gmra.mrb[0].mxu0 %v1084
        %v1318 = vpop.f32.mrb[0].mxu0
        %v1319 = vadd.f32 %v1098, %v1318
        %v1320 = vpop.f32.mrb[0].mxu0
        %v1321 = vpop.f32.mrb[0].mxu0
        %v1322 = vadd.f32 %v1098, %v1321
        %v1323 = vpop.f32.mrb[0].mxu0
        %1324 = vmatprep.mubr.bf16.mxu0 %v1087
        %1325 = vmatmul.mubr.bf16.gmra.mrb[0].mxu0 %v1086
        %v1326 = vpop.f32.mrb[0].mxu0
        %v1327 = vadd.f32 %v1098, %v1326
        %v1328 = vpop.f32.mrb[0].mxu0
        %v1329 = vpop.f32.mrb[0].mxu0
        %v1330 = vadd.f32 %v1098, %v1329
        %v1331 = vpop.f32.mrb[0].mxu0
        %1332 = vmatprep.mubr.bf16.mxu0 %v1089
        %1333 = vmatmul.mubr.bf16.gmra.mrb[0].mxu0 %v1088
        %v1334 = vpop.f32.mrb[0].mxu0
        %v1335 = vadd.f32 %v1098, %v1334
        %v1336 = vpop.f32.mrb[0].mxu0
        %v1337 = vpop.f32.mrb[0].mxu0
        %v1338 = vadd.f32 %v1098, %v1337
        %v1339 = vpop.f32.mrb[0].mxu0
        %1340 = vmatprep.mubr.bf16.mxu0 %v1091
        %1341 = vmatmul.mubr.bf16.gmra.mrb[0].mxu0 %v1090
        %v1342 = vpop.f32.mrb[0].mxu0
        %v1343 = vadd.f32 %v1098, %v1342
        %v1344 = vpop.f32.mrb[0].mxu0
        %v1345 = vpop.f32.mrb[0].mxu0
        %v1346 = vadd.f32 %v1098, %v1345
        %v1347 = vpop.f32.mrb[0].mxu0
        %1348 = vmatprep.mubr.bf16.mxu0 %v1093
        %1349 = vmatmul.mubr.bf16.gmra.mrb[0].mxu0 %v1092
        %v1350 = vpop.f32.mrb[0].mxu0
        %v1351 = vadd.f32 %v1098, %v1350
        %v1352 = vpop.f32.mrb[0].mxu0
        %v1353 = vpop.f32.mrb[0].mxu0
        %v1354 = vadd.f32 %v1098, %v1353
        %v1355 = vpop.f32.mrb[0].mxu0
        %1356 = vdwg.mxu0
        %v1357 = vmax.f32 %v1231, 0.0
        %v1358 = vmax.f32 %v1234, 0.0
        %v1359 = vmax.f32 %v1239, 0.0
        %v1360 = vmax.f32 %v1242, 0.0
        %v1361 = vmax.f32 %v1247, 0.0
        %v1362 = vmax.f32 %v1250, 0.0
        %v1363 = vmax.f32 %v1255, 0.0
        %v1364 = vmax.f32 %v1258, 0.0
        %v1365 = vmax.f32 %v1263, 0.0
        %v1366 = vmax.f32 %v1266, 0.0
        %v1367 = vmax.f32 %v1271, 0.0
        %v1368 = vmax.f32 %v1274, 0.0
        %v1369 = vmax.f32 %v1279, 0.0
        %v1370 = vmax.f32 %v1282, 0.0
        %v1371 = vmax.f32 %v1287, 0.0
        %v1372 = vmax.f32 %v1290, 0.0
        %v1373 = vmax.f32 %v1295, 0.0
        %v1374 = vmax.f32 %v1298, 0.0
        %v1375 = vmax.f32 %v1303, 0.0
        %v1376 = vmax.f32 %v1306, 0.0
        %v1377 = vmax.f32 %v1311, 0.0
        %v1378 = vmax.f32 %v1314, 0.0
        %v1379 = vmax.f32 %v1319, 0.0
        %v1380 = vmax.f32 %v1322, 0.0
        %v1381 = vmax.f32 %v1327, 0.0
        %v1382 = vmax.f32 %v1330, 0.0
        %v1383 = vmax.f32 %v1335, 0.0
        %v1384 = vmax.f32 %v1338, 0.0
        %v1385 = vmax.f32 %v1343, 0.0
        %v1386 = vmax.f32 %v1346, 0.0
        %v1387 = vmax.f32 %v1351, 0.0
        %v1388 = vmax.f32 %v1354, 0.0
        %v1389 = vld [vmem:[%s7] sm:$0xf]
        %v1390 = vld [vmem:[%s7 + $0x4] sm:$0xf]
        %v1391 = vld [vmem:[%s7 + $0x8] sm:$0xf]
        %v1392 = vld [vmem:[%s7 + $0xc] sm:$0xf]
        %v1393 = vld [vmem:[%s7 + $0x10] sm:$0xf]
        %v1394 = vld [vmem:[%s7 + $0x14] sm:$0xf]
        %v1395 = vld [vmem:[%s7 + $0x18] sm:$0xf]
        %v1396 = vld [vmem:[%s7 + $0x1c] sm:$0xf]
        %v1397 = vld [vmem:[%s7 + $0x20] sm:$0xf]
        %v1398 = vld [vmem:[%s7 + $0x24] sm:$0xf]
        %v1399 = vld [vmem:[%s7 + $0x28] sm:$0xf]
        %v1400 = vld [vmem:[%s7 + $0x2c] sm:$0xf]
        %v1401 = vld [vmem:[%s7 + $0x30] sm:$0xf]
        %v1402 = vld [vmem:[%s7 + $0x34] sm:$0xf]
        %v1403 = vld [vmem:[%s7 + $0x38] sm:$0xf]
        %v1404 = vld [vmem:[%s7 + $0x3c] sm:$0xf]
        %v1405 = vld [vmem:[%s8] sm:$0x1]
        %v1406 = vpack.c.bf16 %v1358, %v1357
        %v1407 = vpack.c.bf16 %v1360, %v1359
        %v1408 = vpack.c.bf16 %v1362, %v1361
        %v1409 = vpack.c.bf16 %v1364, %v1363
        %v1410 = vpack.c.bf16 %v1366, %v1365
        %v1411 = vpack.c.bf16 %v1368, %v1367
        %v1412 = vpack.c.bf16 %v1370, %v1369
        %v1413 = vpack.c.bf16 %v1372, %v1371
        %v1414 = vpack.c.bf16 %v1374, %v1373
        %v1415 = vpack.c.bf16 %v1376, %v1375
        %v1416 = vpack.c.bf16 %v1378, %v1377
        %v1417 = vpack.c.bf16 %v1380, %v1379
        %v1418 = vpack.c.bf16 %v1382, %v1381
        %v1419 = vpack.c.bf16 %v1384, %v1383
        %v1420 = vpack.c.bf16 %v1386, %v1385
        %v1421 = vpack.c.bf16 %v1388, %v1387
        %v1423 = vlaneseq
        %v1424 = vshrl.u32 %v1423, 7
        %v1425 = vsub.s32 0, %v1424
        %v1426 = vrot.slane %v1405, %v1425
        %v1444 = vunpack.c.l.b16 %v1389
        %v1445 = vunpack.c.l.b16 %v1390
        %v1446 = vunpack.c.l.b16 %v1391
        %v1447 = vunpack.c.l.b16 %v1392
        %v1448 = vunpack.c.l.b16 %v1393
        %v1449 = vunpack.c.l.b16 %v1394
        %v1450 = vunpack.c.l.b16 %v1395
        %v1451 = vunpack.c.l.b16 %v1396
        %v1452 = vunpack.c.l.b16 %v1397
        %v1453 = vunpack.c.l.b16 %v1398
        %v1454 = vunpack.c.l.b16 %v1399
        %v1455 = vunpack.c.l.b16 %v1400
        %v1456 = vunpack.c.l.b16 %v1401
        %v1457 = vunpack.c.l.b16 %v1402
        %v1458 = vunpack.c.l.b16 %v1403
        %v1459 = vunpack.c.l.b16 %v1404
        %v1460 = vpack.c.b16 %v1445, %v1444
        %v1461 = vpack.c.b16 %v1447, %v1446
        %v1462 = vpack.c.b16 %v1449, %v1448
        %v1463 = vpack.c.b16 %v1451, %v1450
        %v1464 = vpack.c.b16 %v1453, %v1452
        %v1465 = vpack.c.b16 %v1455, %v1454
        %v1466 = vpack.c.b16 %v1457, %v1456
        %v1467 = vpack.c.b16 %v1459, %v1458
        %1476 = vmatprep.subr.bf16.mxu0 0
        %1477 = vmatpush1.bf16.msra.mxu0 %v1460
        %1478 = vmatprep.subr.bf16.mxu0 0
        %1479 = vmatpush1.bf16.msra.mxu0 %v1461
        %1480 = vmatprep.subr.bf16.mxu0 0
        %1481 = vmatpush1.bf16.msra.mxu0 %v1462
        %1482 = vmatprep.subr.bf16.mxu0 0
        %1483 = vmatpush1.bf16.msra.mxu0 %v1463
        %1484 = vmatprep.subr.bf16.mxu0 0
        %1485 = vmatpush1.bf16.msra.mxu0 %v1464
        %1486 = vmatprep.subr.bf16.mxu0 0
        %1487 = vmatpush1.bf16.msra.mxu0 %v1465
        %1488 = vmatprep.subr.bf16.mxu0 0
        %1489 = vmatpush1.bf16.msra.mxu0 %v1466
        %1490 = vmatprep.subr.bf16.mxu0 0
        %1491 = vmatpush1.bf16.msra.mxu0 %v1467
        %1492 = vmatprep.subr.bf16.mxu0 0
        %1493 = vmatpush1.bf16.msra.mxu0 0
        %1494 = vmatprep.subr.bf16.mxu0 0
        %1495 = vmatpush1.bf16.msra.mxu0 0
        %1496 = vmatprep.subr.bf16.mxu0 0
        %1497 = vmatpush1.bf16.msra.mxu0 0
        %1498 = vmatprep.subr.bf16.mxu0 0
        %1499 = vmatpush1.bf16.msra.mxu0 0
        %1500 = vmatprep.subr.bf16.mxu0 0
        %1501 = vmatpush1.bf16.msra.mxu0 0
        %1502 = vmatprep.subr.bf16.mxu0 0
        %1503 = vmatpush1.bf16.msra.mxu0 0
        %1504 = vmatprep.subr.bf16.mxu0 0
        %1505 = vmatpush1.bf16.msra.mxu0 0
        %1506 = vmatprep.subr.bf16.mxu0 0
        %1507 = vmatpush1.bf16.msra.mxu0 0
        %1508 = vmatprep.mubr.bf16.mxu0 0
        %1509 = vmatmul.mubr.bf16.gmra.mrb[0].mxu0 %v1406
        %v1510 = vpop.f32.mrb[0].mxu0
        %v1511 = vadd.f32 %v1426, %v1510
        %v1512 = vpop.f32.mrb[0].mxu0
        %v1513 = vpop.f32.mrb[0].mxu0
        %v1514 = vadd.f32 %v1426, %v1513
        %v1515 = vpop.f32.mrb[0].mxu0
        %1516 = vmatprep.mubr.bf16.mxu0 0
        %1517 = vmatmul.mubr.bf16.gmra.mrb[0].mxu0 %v1407
        %v1518 = vpop.f32.mrb[0].mxu0
        %v1519 = vadd.f32 %v1426, %v1518
        %v1520 = vpop.f32.mrb[0].mxu0
        %v1521 = vpop.f32.mrb[0].mxu0
        %v1522 = vadd.f32 %v1426, %v1521
        %v1523 = vpop.f32.mrb[0].mxu0
        %1524 = vmatprep.mubr.bf16.mxu0 0
        %1525 = vmatmul.mubr.bf16.gmra.mrb[0].mxu0 %v1408
        %v1526 = vpop.f32.mrb[0].mxu0
        %v1527 = vadd.f32 %v1426, %v1526
        %v1528 = vpop.f32.mrb[0].mxu0
        %v1529 = vpop.f32.mrb[0].mxu0
        %v1530 = vadd.f32 %v1426, %v1529
        %v1531 = vpop.f32.mrb[0].mxu0
        %1532 = vmatprep.mubr.bf16.mxu0 0
        %1533 = vmatmul.mubr.bf16.gmra.mrb[0].mxu0 %v1409
        %v1534 = vpop.f32.mrb[0].mxu0
        %v1535 = vadd.f32 %v1426, %v1534
        %v1536 = vpop.f32.mrb[0].mxu0
        %v1537 = vpop.f32.mrb[0].mxu0
        %v1538 = vadd.f32 %v1426, %v1537
        %v1539 = vpop.f32.mrb[0].mxu0
        %1540 = vmatprep.mubr.bf16.mxu0 0
        %1541 = vmatmul.mubr.bf16.gmra.mrb[0].mxu0 %v1410
        %v1542 = vpop.f32.mrb[0].mxu0
        %v1543 = vadd.f32 %v1426, %v1542
        %v1544 = vpop.f32.mrb[0].mxu0
        %v1545 = vpop.f32.mrb[0].mxu0
        %v1546 = vadd.f32 %v1426, %v1545
        %v1547 = vpop.f32.mrb[0].mxu0
        %1548 = vmatprep.mubr.bf16.mxu0 0
        %1549 = vmatmul.mubr.bf16.gmra.mrb[0].mxu0 %v1411
        %v1550 = vpop.f32.mrb[0].mxu0
        %v1551 = vadd.f32 %v1426, %v1550
        %v1552 = vpop.f32.mrb[0].mxu0
        %v1553 = vpop.f32.mrb[0].mxu0
        %v1554 = vadd.f32 %v1426, %v1553
        %v1555 = vpop.f32.mrb[0].mxu0
        %1556 = vmatprep.mubr.bf16.mxu0 0
        %1557 = vmatmul.mubr.bf16.gmra.mrb[0].mxu0 %v1412
        %v1558 = vpop.f32.mrb[0].mxu0
        %v1559 = vadd.f32 %v1426, %v1558
        %v1560 = vpop.f32.mrb[0].mxu0
        %v1561 = vpop.f32.mrb[0].mxu0
        %v1562 = vadd.f32 %v1426, %v1561
        %v1563 = vpop.f32.mrb[0].mxu0
        %1564 = vmatprep.mubr.bf16.mxu0 0
        %1565 = vmatmul.mubr.bf16.gmra.mrb[0].mxu0 %v1413
        %v1566 = vpop.f32.mrb[0].mxu0
        %v1567 = vadd.f32 %v1426, %v1566
        %v1568 = vpop.f32.mrb[0].mxu0
        %v1569 = vpop.f32.mrb[0].mxu0
        %v1570 = vadd.f32 %v1426, %v1569
        %v1571 = vpop.f32.mrb[0].mxu0
        %1572 = vmatprep.mubr.bf16.mxu0 0
        %1573 = vmatmul.mubr.bf16.gmra.mrb[0].mxu0 %v1414
        %v1574 = vpop.f32.mrb[0].mxu0
        %v1575 = vadd.f32 %v1426, %v1574
        %v1576 = vpop.f32.mrb[0].mxu0
        %v1577 = vpop.f32.mrb[0].mxu0
        %v1578 = vadd.f32 %v1426, %v1577
        %v1579 = vpop.f32.mrb[0].mxu0
        %1580 = vmatprep.mubr.bf16.mxu0 0
        %1581 = vmatmul.mubr.bf16.gmra.mrb[0].mxu0 %v1415
        %v1582 = vpop.f32.mrb[0].mxu0
        %v1583 = vadd.f32 %v1426, %v1582
        %v1584 = vpop.f32.mrb[0].mxu0
        %v1585 = vpop.f32.mrb[0].mxu0
        %v1586 = vadd.f32 %v1426, %v1585
        %v1587 = vpop.f32.mrb[0].mxu0
        %1588 = vmatprep.mubr.bf16.mxu0 0
        %1589 = vmatmul.mubr.bf16.gmra.mrb[0].mxu0 %v1416
        %v1590 = vpop.f32.mrb[0].mxu0
        %v1591 = vadd.f32 %v1426, %v1590
        %v1592 = vpop.f32.mrb[0].mxu0
        %v1593 = vpop.f32.mrb[0].mxu0
        %v1594 = vadd.f32 %v1426, %v1593
        %v1595 = vpop.f32.mrb[0].mxu0
        %1596 = vmatprep.mubr.bf16.mxu0 0
        %1597 = vmatmul.mubr.bf16.gmra.mrb[0].mxu0 %v1417
        %v1598 = vpop.f32.mrb[0].mxu0
        %v1599 = vadd.f32 %v1426, %v1598
        %v1600 = vpop.f32.mrb[0].mxu0
        %v1601 = vpop.f32.mrb[0].mxu0
        %v1602 = vadd.f32 %v1426, %v1601
        %v1603 = vpop.f32.mrb[0].mxu0
        %1604 = vmatprep.mubr.bf16.mxu0 0
        %1605 = vmatmul.mubr.bf16.gmra.mrb[0].mxu0 %v1418
        %v1606 = vpop.f32.mrb[0].mxu0
        %v1607 = vadd.f32 %v1426, %v1606
        %v1608 = vpop.f32.mrb[0].mxu0
        %v1609 = vpop.f32.mrb[0].mxu0
        %v1610 = vadd.f32 %v1426, %v1609
        %v1611 = vpop.f32.mrb[0].mxu0
        %1612 = vmatprep.mubr.bf16.mxu0 0
        %1613 = vmatmul.mubr.bf16.gmra.mrb[0].mxu0 %v1419
        %v1614 = vpop.f32.mrb[0].mxu0
        %v1615 = vadd.f32 %v1426, %v1614
        %v1616 = vpop.f32.mrb[0].mxu0
        %v1617 = vpop.f32.mrb[0].mxu0
        %v1618 = vadd.f32 %v1426, %v1617
        %v1619 = vpop.f32.mrb[0].mxu0
        %1620 = vmatprep.mubr.bf16.mxu0 0
        %1621 = vmatmul.mubr.bf16.gmra.mrb[0].mxu0 %v1420
        %v1622 = vpop.f32.mrb[0].mxu0
        %v1623 = vadd.f32 %v1426, %v1622
        %v1624 = vpop.f32.mrb[0].mxu0
        %v1625 = vpop.f32.mrb[0].mxu0
        %v1626 = vadd.f32 %v1426, %v1625
        %v1627 = vpop.f32.mrb[0].mxu0
        %1628 = vmatprep.mubr.bf16.mxu0 0
        %1629 = vmatmul.mubr.bf16.gmra.mrb[0].mxu0 %v1421
        %v1630 = vpop.f32.mrb[0].mxu0
        %v1631 = vadd.f32 %v1426, %v1630
        %v1632 = vpop.f32.mrb[0].mxu0
        %v1633 = vpop.f32.mrb[0].mxu0
        %v1634 = vadd.f32 %v1426, %v1633
        %v1635 = vpop.f32.mrb[0].mxu0
        %1636 = vdwg.mxu0
        %1637 = vst [vmem:[%s326] sm:$0xff] %v1511
        %1638 = vst [vmem:[%s326 + $0x8] sm:$0xff] %v1514
        %1639 = vst [vmem:[%s326 + $0x10] sm:$0xff] %v1519
        %1640 = vst [vmem:[%s326 + $0x18] sm:$0xff] %v1522
        %1641 = vst [vmem:[%s326 + $0x20] sm:$0xff] %v1527
        %1642 = vst [vmem:[%s326 + $0x28] sm:$0xff] %v1530
        %1643 = vst [vmem:[%s326 + $0x30] sm:$0xff] %v1535
        %1644 = vst [vmem:[%s326 + $0x38] sm:$0xff] %v1538
        %1645 = vst [vmem:[%s326 + $0x40] sm:$0xff] %v1543
        %1646 = vst [vmem:[%s326 + $0x48] sm:$0xff] %v1546
        %1647 = vst [vmem:[%s326 + $0x50] sm:$0xff] %v1551
        %1648 = vst [vmem:[%s326 + $0x58] sm:$0xff] %v1554
        %1649 = vst [vmem:[%s326 + $0x60] sm:$0xff] %v1559
        %1650 = vst [vmem:[%s326 + $0x68] sm:$0xff] %v1562
        %1651 = vst [vmem:[%s326 + $0x70] sm:$0xff] %v1567
        %1652 = vst [vmem:[%s326 + $0x78] sm:$0xff] %v1570
        %1653 = vst [vmem:[%s326 + $0x80] sm:$0xff] %v1575
        %1654 = vst [vmem:[%s326 + $0x88] sm:$0xff] %v1578
        %1655 = vst [vmem:[%s326 + $0x90] sm:$0xff] %v1583
        %1656 = vst [vmem:[%s326 + $0x98] sm:$0xff] %v1586
        %1657 = vst [vmem:[%s326 + $0xa0] sm:$0xff] %v1591
        %1658 = vst [vmem:[%s326 + $0xa8] sm:$0xff] %v1594
        %1659 = vst [vmem:[%s326 + $0xb0] sm:$0xff] %v1599
        %1660 = vst [vmem:[%s326 + $0xb8] sm:$0xff] %v1602
        %1661 = vst [vmem:[%s326 + $0xc0] sm:$0xff] %v1607
        %1662 = vst [vmem:[%s326 + $0xc8] sm:$0xff] %v1610
        %1663 = vst [vmem:[%s326 + $0xd0] sm:$0xff] %v1615
        %1664 = vst [vmem:[%s326 + $0xd8] sm:$0xff] %v1618
        %1665 = vst [vmem:[%s326 + $0xe0] sm:$0xff] %v1623
        %1666 = vst [vmem:[%s326 + $0xe8] sm:$0xff] %v1626
        %1667 = vst [vmem:[%s326 + $0xf0] sm:$0xff] %v1631
        %1668 = vst [vmem:[%s326 + $0xf8] sm:$0xff] %v1634
        %s1669 = sand.u32 %s225, 1
        %s1670 = scalar_lea.sflag [#allocation3], %s1669
        %s1671 = sand.u32 %s225, 1
        %s1672 = smul.addr %s1671, 256
        %s1673 = scalar_lea.vmem [#allocation2], %s1672
        // Predicated region
        $region57: #{tpu_custom_call.1} parent=55 // pred_check
          %p1674 = pneg %p235
        $region58: #{tpu_custom_call.1} parent=55 // pred_check_branch
          %1676 = sbr.rel (%p1674) target = $region60
        $region59: #{tpu_custom_call.1} parent=55 // pred_region
          %s1677 = smul.u32 32, %s23
          %s1679 = ssub.s32 4096, 4096
          %1680 = vsyncadd %s1670, %s1679
          %s1681 = smul.addr %s1677, 128
          %s1682 = scalar_lea.hbm %s9, %s1681
          %s1683 = sshll.u32 %s1673, 4
          %s1684 = int_to_ptr.vmem [resolvable:$true] %s1683
          %1689 = dma.vmem_to_hbm [thread:$0]  %s1684, 4096, %s1682, %s1670, 128, 128, 8
        $region60: #{tpu_custom_call.1} parent=55 // pred_fallthru
          _
      $region56: #{tpu_custom_call.1} parent=5 // pred_fallthru
        _
      %p1690 = scmp.le.s32.totalorder 2, %s18
      // Predicated region
      $region61: #{tpu_custom_call.1} parent=5 // pred_check
        %p1691 = pneg %p1690
      $region62: #{tpu_custom_call.1} parent=5 // pred_check_branch
        %1693 = sbr.rel (%p1691) target = $region64
      $region63: #{tpu_custom_call.1} parent=5 // pred_region
        %s1694 = ssub.s32 %s18, 2
        // Predicated region
        $region65: #{tpu_custom_call.1} parent=63 // pred_check
          %p1695 = pneg %p241
        $region66: #{tpu_custom_call.1} parent=63 // pred_check_branch
          %1697 = sbr.rel (%p1695) target = $region68
        $region67: #{tpu_custom_call.1} parent=63 // pred_region
          %s1698 = sand.u32 %s226, 1
          %s1699 = scalar_lea.sflag [#allocation3], %s1698
          %s1700 = sand.u32 %s226, 1
          %s1701 = smul.addr %s1700, 256
          %s1702 = scalar_lea.vmem [#allocation2], %s1701
          %1703 = dma.done %s1699, 4096
        $region68: #{tpu_custom_call.1} parent=63 // pred_fallthru
          _
      $region64: #{tpu_custom_call.1} parent=5 // pred_fallthru
        _
    $region6: #{tpu_custom_call.1} parent=1 // loop_footer
      %s22 = sadd.s32 1, %s18
    $region7: #{tpu_custom_call.1} parent=1 // loop_footer_branch
      %17 = sbr.rel target = $region3
    $region8: #{tpu_custom_call.1} parent=1 // loop_exit
      _
    %1704 = vsyncpa [#allocation3], 1
    %s1705 = scalar_lea.sflag [#allocation3], 1
    %1706 = vsyncpa %s1705, 1

</llo_original>
